<compile_context>
chip_gen: v6e
topology: v6e:2x2x1
jax: 0.10.0
libtpu: 0.0.40
codegen_flags: <defaults>
</compile_context>

<pallas_src>
import jax
import jax.numpy as jnp
from jax import lax
from jax.experimental import pallas as pl
from jax.experimental.pallas import tpu as pltpu


def _round_up(x, m):
    return ((x + m - 1) // m) * m


def gru_chunk_kernel(lens_ref, gi_ref, whh_ref, bhhn_ref, h_ref):
    """One grid step == TC GRU timesteps; hidden state lives in the resident out block."""
    c = pl.program_id(0)
    TC = gi_ref.shape[0]
    Hp = h_ref.shape[1]

    @pl.when(c == 0)
    def _():
        h_ref[...] = jnp.zeros_like(h_ref)

    lens = lens_ref[...]          # (Bp, 1) int32
    whh = whh_ref[...]            # (Hp, 3*Hp)  zero-padded, gate slabs 128-aligned
    bhhn = bhhn_ref[...]          # (1, 3*Hp)   nonzero only on the n-gate slab
    t0 = c * TC

    def step(i, h):
        gi = gi_ref[i]            # (Bp, 3*Hp)  precomputed x-projection (+ fused biases)
        gh = jnp.dot(h, whh, preferred_element_type=jnp.float32) + bhhn
        r = jax.nn.sigmoid(gi[:, 0:Hp] + gh[:, 0:Hp])
        z = jax.nn.sigmoid(gi[:, Hp:2 * Hp] + gh[:, Hp:2 * Hp])
        n = jnp.tanh(gi[:, 2 * Hp:3 * Hp] + r * gh[:, 2 * Hp:3 * Hp])
        h_new = (1.0 - z) * n + z * h
        active = (t0 + i) < lens                    # (Bp, 1) bool
        return jnp.where(active, h_new, h)

    h_ref[...] = lax.fori_loop(0, TC, step, h_ref[...], unroll=True)


def fast_packed_forward(x, lens, params, *, time_chunk=8):
    """x: (T, B, F) zero-padded float32; lens: (B,) int32 (packed-style lengths)."""
    T, B, F = x.shape
    H = params["whh_T"].shape[0]
    Hp = _round_up(H, 128)                 # 128-lane slab per gate
    Bp = _round_up(max(B, 8), 8)           # >= 8 sublanes
    TC = max(1, min(time_chunk, T))
    Tp = TC * pl.cdiv(T, TC)
    n_chunks = Tp // TC

    wih_T = params["wih_T"]                # (F, 3H), gate order r|z|n
    whh_T = params["whh_T"]                # (H, 3H)
    bih = params["bih"].reshape(3 * H)
    bhh = params["bhh"].reshape(3 * H)

    # Build gate-slab-padded weights; fold b_hh into the hoisted bias for r, z.
    wih_pad = jnp.zeros((F, 3 * Hp), jnp.float32)
    whh_pad = jnp.zeros((Hp, 3 * Hp), jnp.float32)
    bias_pad = jnp.zeros((3 * Hp,), jnp.float32)
    bhhn_pad = jnp.zeros((1, 3 * Hp), jnp.float32)
    for g in range(3):
        src = slice(g * H, (g + 1) * H)
        dst = slice(g * Hp, g * Hp + H)
        wih_pad = wih_pad.at[:, dst].set(wih_T[:, src])
        whh_pad = whh_pad.at[:H, dst].set(whh_T[:, src])
        fused = bih[src] + (bhh[src] if g < 2 else 0.0)
        bias_pad = bias_pad.at[dst].set(fused)
    bhhn_pad = bhhn_pad.at[0, 2 * Hp:2 * Hp + H].set(bhh[2 * H:3 * H])

    # Hoisted input projection: one big MXU-friendly matmul over all timesteps.
    x_pad = jnp.zeros((Tp, Bp, F), jnp.float32).at[:T, :B, :].set(x)
    gi = (x_pad.reshape(Tp * Bp, F) @ wih_pad + bias_pad).reshape(Tp, Bp, 3 * Hp)

    lens_pad = jnp.zeros((Bp, 1), jnp.int32).at[:B, 0].set(lens.astype(jnp.int32))

    h_final = pl.pallas_call(
        gru_chunk_kernel,
        out_shape=jax.ShapeDtypeStruct((Bp, Hp), jnp.float32),
        grid_spec=pltpu.PrefetchScalarGridSpec(
            num_scalar_prefetch=0,
            grid=(n_chunks,),
            in_specs=[
                pl.BlockSpec((Bp, 1), lambda c: (0, 0)),            # lens
                pl.BlockSpec((TC, Bp, 3 * Hp), lambda c: (c, 0, 0)),  # gi chunk (streamed)
                pl.BlockSpec((Hp, 3 * Hp), lambda c: (0, 0)),        # W_hh^T (resident)
                pl.BlockSpec((1, 3 * Hp), lambda c: (0, 0)),         # b_hn slab (resident)
            ],
            out_specs=pl.BlockSpec((Bp, Hp), lambda c: (0, 0)),      # resident hidden state
        ),
        compiler_params=pltpu.CompilerParams(
            dimension_semantics=("arbitrary",)),  # time recurrence is serial
    )(lens_pad, gi, whh_pad, bhhn_pad)

    # Final Linear in plain JAX (tiny GEMM, lets XLA fuse it).
    logits = h_final[:B, :H] @ params["wlin_T"] + params["blin"]
    # Original module: Linear runs on packed data, THEN pad_packed_sequence pads
    # with zeros, so rows of sequences shorter than T are exactly zero at h4[-1].
    return jnp.where((lens == T)[:, None], logits, 0.0)


def reference_forward(x, lens, params):
    """Pure-JAX reference of the packed GRU + Linear + pad + h4[-1] semantics."""
    T, B, F = x.shape
    H = params["whh_T"].shape[0]

    def step(h, inp):
        x_t, t = inp
        gi = x_t @ params["wih_T"] + params["bih"]
        gh = h @ params["whh_T"] + params["bhh"]
        r = jax.nn.sigmoid(gi[:, 0:H] + gh[:, 0:H])
        z = jax.nn.sigmoid(gi[:, H:2 * H] + gh[:, H:2 * H])
        n = jnp.tanh(gi[:, 2 * H:3 * H] + r * gh[:, 2 * H:3 * H])
        h_new = (1.0 - z) * n + z * h
        active = (t < lens)[:, None]
        return jnp.where(active, h_new, h), None

    h0 = jnp.zeros((B, H), jnp.float32)
    h_final, _ = lax.scan(step, h0, (x, jnp.arange(T)))
    logits = h_final @ params["wlin_T"] + params["blin"]
    return jnp.where((lens == T)[:, None], logits, 0.0)


def init_params(key, features, rnn_size, classes):
    kih, khh, kbih, kbhh, kwl, kbl = jax.random.split(key, 6)
    s = 1.0 / jnp.sqrt(rnn_size)
    return {
        "wih_T": jax.random.uniform(kih, (features, 3 * rnn_size), jnp.float32, -s, s),
        "whh_T": jax.random.uniform(khh, (rnn_size, 3 * rnn_size), jnp.float32, -s, s),
        "bih": jax.random.uniform(kbih, (1, 3 * rnn_size), jnp.float32, -s, s),
        "bhh": jax.random.uniform(kbhh, (1, 3 * rnn_size), jnp.float32, -s, s),
        "wlin_T": jax.random.uniform(kwl, (rnn_size, classes), jnp.float32, -s, s),
        "blin": jax.random.uniform(kbl, (1, classes), jnp.float32, -s, s),
    }


if __name__ == "__main__":
    T, B, F, H, C = 8, 2, 16, 32, 8   # seq, batch, features, rnn_size, classes

    key = jax.random.PRNGKey(0)
    kx, kp = jax.random.split(key)
    x = jax.random.normal(kx, (T, B, F), jnp.float32)
    lens = jnp.array([8, 5], jnp.int32)          # packed sequences: descending lengths
    # zero out padded positions like a real packed batch would have
    mask = (jnp.arange(T)[:, None] < lens[None, :])[:, :, None]
    x = x * mask.astype(x.dtype)

    params = init_params(kp, F, H, C)

    out = jax.jit(fast_packed_forward)(x, lens, params)
    jax.block_until_ready(out)

    ref = reference_forward(x, lens, params)
    assert out.shape == (B, C)
    assert jnp.allclose(out, ref, atol=1e-5, rtol=1e-5)

    # TODO(synk): for v6e/v7x peak MXU rate, cast W_hh / gi to bfloat16 (needs a
    # looser tolerance than 1e-5); kept f32 here to preserve exact reference match.
    print("KERNEL_OK")
</pallas_src>

<mosaic_0001>
module attributes {stable_mosaic.version = 11 : i64} {
  func.func @gru_chunk_kernel(%arg0: i32, %arg1: memref<8x1xi32, #tpu.memory_space<vmem>>, %arg2: memref<8x8x384xf32, #tpu.memory_space<vmem>>, %arg3: memref<128x384xf32, #tpu.memory_space<vmem>>, %arg4: memref<1x384xf32, #tpu.memory_space<vmem>>, %arg5: memref<8x128xf32, #tpu.memory_space<vmem>>) attributes {dimension_semantics = [#tpu.dimension_semantics<arbitrary>], iteration_bounds = array<i64: 1>, scalar_prefetch = 0 : i64, scratch_operands = 0 : i64, tpu.core_type = #tpu.core_type<tc>, window_params = [{pipeline_mode = #tpu.pipeline_mode<synchronous>, transform_indices = @transform_0, window_bounds = array<i64: 8, 1>}, {transform_indices = @transform_1, window_bounds = array<i64: 8, 8, 384>}, {pipeline_mode = #tpu.pipeline_mode<synchronous>, transform_indices = @transform_2, window_bounds = array<i64: 128, 384>}, {pipeline_mode = #tpu.pipeline_mode<synchronous>, transform_indices = @transform_3, window_bounds = array<i64: 1, 384>}, {pipeline_mode = #tpu.pipeline_mode<synchronous>, transform_indices = @transform_4, window_bounds = array<i64: 8, 128>}]} {
    %c0_i32 = arith.constant 0 : i32
    %0 = arith.cmpi eq, %arg0, %c0_i32 : i32
    %1 = arith.extui %0 : i1 to i32
    %c0_i32_0 = arith.constant 0 : i32
    %2 = arith.cmpi ne, %1, %c0_i32_0 : i32
    scf.if %2 {
      %cst_59 = arith.constant 0.000000e+00 : f32
      %313 = vector.broadcast %cst_59 : f32 to vector<8x128xf32>
      %c0_60 = arith.constant 0 : index
      %c0_61 = arith.constant 0 : index
      %314 = vector.load %arg5[%c0_60, %c0_61] : memref<8x128xf32, #tpu.memory_space<vmem>>, vector<8x128xf32>
      tpu.vector_store %arg5[%c0_60, %c0_61], %313 {strides = array<i32>} : memref<8x128xf32, #tpu.memory_space<vmem>>, vector<8x128xf32>,
    } else {
    }
    %c0 = arith.constant 0 : index
    %c0_1 = arith.constant 0 : index
    %3 = vector.load %arg1[%c0, %c0_1] : memref<8x1xi32, #tpu.memory_space<vmem>>, vector<8x1xi32>
    %c0_2 = arith.constant 0 : index
    %c0_3 = arith.constant 0 : index
    %4 = vector.load %arg3[%c0_2, %c0_3] : memref<128x384xf32, #tpu.memory_space<vmem>>, vector<128x384xf32>
    %c0_4 = arith.constant 0 : index
    %c0_5 = arith.constant 0 : index
    %5 = vector.load %arg4[%c0_4, %c0_5] : memref<1x384xf32, #tpu.memory_space<vmem>>, vector<1x384xf32>
    %c8_i32 = arith.constant 8 : i32
    %6 = arith.muli %arg0, %c8_i32 : i32
    %c0_6 = arith.constant 0 : index
    %c0_7 = arith.constant 0 : index
    %7 = vector.load %arg5[%c0_6, %c0_7] : memref<8x128xf32, #tpu.memory_space<vmem>>, vector<8x128xf32>
    %c0_i32_8 = arith.constant 0 : i32
    %8 = arith.index_cast %c0_i32_8 : i32 to index
    %c0_9 = arith.constant 0 : index
    %c0_10 = arith.constant 0 : index
    %9 = vector.load %arg2[%8, %c0_9, %c0_10] : memref<8x8x384xf32, #tpu.memory_space<vmem>>, vector<1x8x384xf32>
    %10 = vector.shape_cast %9 : vector<1x8x384xf32> to vector<8x384xf32>
    %cst = arith.constant dense<0.000000e+00> : vector<8x384xf32>
    %11 = tpu.matmul %7, %4, %cst {dimension_numbers = #tpu.dot_dimension_numbers<[1], [0], [0], [1], [0, 0, 1, 1], [], []>} : vector<8x128xf32>, vector<128x384xf32>, vector<8x384xf32> -> vector<8x384xf32>
    %12 = vector.broadcast %5 : vector<1x384xf32> to vector<8x384xf32>
    %13 = arith.addf %11, %12 : vector<8x384xf32>
    %14 = vector.extract_strided_slice %10 {offsets = [0, 0], sizes = [8, 128], strides = [1, 1]} : vector<8x384xf32> to vector<8x128xf32>
    %15 = vector.extract_strided_slice %13 {offsets = [0, 0], sizes = [8, 128], strides = [1, 1]} : vector<8x384xf32> to vector<8x128xf32>
    %16 = arith.addf %14, %15 : vector<8x128xf32>
    %17 = arith.negf %16 : vector<8x128xf32>
    %18 = math.exp %17 : vector<8x128xf32>
    %cst_11 = arith.constant 1.000000e+00 : f32
    %19 = vector.broadcast %cst_11 : f32 to vector<8x128xf32>
    %20 = arith.addf %19, %18 : vector<8x128xf32>
    %21 = arith.divf %19, %20 : vector<8x128xf32>
    %22 = vector.extract_strided_slice %10 {offsets = [0, 128], sizes = [8, 128], strides = [1, 1]} : vector<8x384xf32> to vector<8x128xf32>
    %23 = vector.extract_strided_slice %13 {offsets = [0, 128], sizes = [8, 128], strides = [1, 1]} : vector<8x384xf32> to vector<8x128xf32>
    %24 = arith.addf %22, %23 : vector<8x128xf32>
    %25 = arith.negf %24 : vector<8x128xf32>
    %26 = math.exp %25 : vector<8x128xf32>
    %cst_12 = arith.constant 1.000000e+00 : f32
    %27 = vector.broadcast %cst_12 : f32 to vector<8x128xf32>
    %28 = arith.addf %27, %26 : vector<8x128xf32>
    %29 = arith.divf %27, %28 : vector<8x128xf32>
    %30 = vector.extract_strided_slice %10 {offsets = [0, 256], sizes = [8, 128], strides = [1, 1]} : vector<8x384xf32> to vector<8x128xf32>
    %31 = vector.extract_strided_slice %13 {offsets = [0, 256], sizes = [8, 128], strides = [1, 1]} : vector<8x384xf32> to vector<8x128xf32>
    %32 = arith.mulf %21, %31 : vector<8x128xf32>
    %33 = arith.addf %30, %32 : vector<8x128xf32>
    %34 = math.tanh %33 : vector<8x128xf32>
    %cst_13 = arith.constant 1.000000e+00 : f32
    %35 = vector.broadcast %cst_13 : f32 to vector<8x128xf32>
    %36 = arith.subf %35, %29 : vector<8x128xf32>
    %37 = arith.mulf %36, %34 : vector<8x128xf32>
    %38 = arith.mulf %29, %7 : vector<8x128xf32>
    %39 = arith.addf %37, %38 : vector<8x128xf32>
    %40 = arith.addi %6, %c0_i32_8 : i32
    %41 = vector.broadcast %40 : i32 to vector<8x1xi32>
    %42 = arith.cmpi slt, %41, %3 : vector<8x1xi32>
    %43 = vector.shape_cast %42 : vector<8x1xi1> to vector<8x1xi1>
    %44 = vector.broadcast %43 : vector<8x1xi1> to vector<8x128xi1>
    %45 = arith.select %44, %39, %7 : vector<8x128xi1>, vector<8x128xf32>
    %c1_i32 = arith.constant 1 : i32
    %46 = arith.index_cast %c1_i32 : i32 to index
    %c0_14 = arith.constant 0 : index
    %c0_15 = arith.constant 0 : index
    %47 = vector.load %arg2[%46, %c0_14, %c0_15] : memref<8x8x384xf32, #tpu.memory_space<vmem>>, vector<1x8x384xf32>
    %48 = vector.shape_cast %47 : vector<1x8x384xf32> to vector<8x384xf32>
    %cst_16 = arith.constant dense<0.000000e+00> : vector<8x384xf32>
    %49 = tpu.matmul %45, %4, %cst_16 {dimension_numbers = #tpu.dot_dimension_numbers<[1], [0], [0], [1], [0, 0, 1, 1], [], []>} : vector<8x128xf32>, vector<128x384xf32>, vector<8x384xf32> -> vector<8x384xf32>
    %50 = vector.broadcast %5 : vector<1x384xf32> to vector<8x384xf32>
    %51 = arith.addf %49, %50 : vector<8x384xf32>
    %52 = vector.extract_strided_slice %48 {offsets = [0, 0], sizes = [8, 128], strides = [1, 1]} : vector<8x384xf32> to vector<8x128xf32>
    %53 = vector.extract_strided_slice %51 {offsets = [0, 0], sizes = [8, 128], strides = [1, 1]} : vector<8x384xf32> to vector<8x128xf32>
    %54 = arith.addf %52, %53 : vector<8x128xf32>
    %55 = arith.negf %54 : vector<8x128xf32>
    %56 = math.exp %55 : vector<8x128xf32>
    %cst_17 = arith.constant 1.000000e+00 : f32
    %57 = vector.broadcast %cst_17 : f32 to vector<8x128xf32>
    %58 = arith.addf %57, %56 : vector<8x128xf32>
    %59 = arith.divf %57, %58 : vector<8x128xf32>
    %60 = vector.extract_strided_slice %48 {offsets = [0, 128], sizes = [8, 128], strides = [1, 1]} : vector<8x384xf32> to vector<8x128xf32>
    %61 = vector.extract_strided_slice %51 {offsets = [0, 128], sizes = [8, 128], strides = [1, 1]} : vector<8x384xf32> to vector<8x128xf32>
    %62 = arith.addf %60, %61 : vector<8x128xf32>
    %63 = arith.negf %62 : vector<8x128xf32>
    %64 = math.exp %63 : vector<8x128xf32>
    %cst_18 = arith.constant 1.000000e+00 : f32
    %65 = vector.broadcast %cst_18 : f32 to vector<8x128xf32>
    %66 = arith.addf %65, %64 : vector<8x128xf32>
    %67 = arith.divf %65, %66 : vector<8x128xf32>
    %68 = vector.extract_strided_slice %48 {offsets = [0, 256], sizes = [8, 128], strides = [1, 1]} : vector<8x384xf32> to vector<8x128xf32>
    %69 = vector.extract_strided_slice %51 {offsets = [0, 256], sizes = [8, 128], strides = [1, 1]} : vector<8x384xf32> to vector<8x128xf32>
    %70 = arith.mulf %59, %69 : vector<8x128xf32>
    %71 = arith.addf %68, %70 : vector<8x128xf32>
    %72 = math.tanh %71 : vector<8x128xf32>
    %cst_19 = arith.constant 1.000000e+00 : f32
    %73 = vector.broadcast %cst_19 : f32 to vector<8x128xf32>
    %74 = arith.subf %73, %67 : vector<8x128xf32>
    %75 = arith.mulf %74, %72 : vector<8x128xf32>
    %76 = arith.mulf %67, %45 : vector<8x128xf32>
    %77 = arith.addf %75, %76 : vector<8x128xf32>
    %78 = arith.addi %6, %c1_i32 : i32
    %79 = vector.broadcast %78 : i32 to vector<8x1xi32>
    %80 = arith.cmpi slt, %79, %3 : vector<8x1xi32>
    %81 = vector.shape_cast %80 : vector<8x1xi1> to vector<8x1xi1>
    %82 = vector.broadcast %81 : vector<8x1xi1> to vector<8x128xi1>
    %83 = arith.select %82, %77, %45 : vector<8x128xi1>, vector<8x128xf32>
    %c2_i32 = arith.constant 2 : i32
    %84 = arith.index_cast %c2_i32 : i32 to index
    %c0_20 = arith.constant 0 : index
    %c0_21 = arith.constant 0 : index
    %85 = vector.load %arg2[%84, %c0_20, %c0_21] : memref<8x8x384xf32, #tpu.memory_space<vmem>>, vector<1x8x384xf32>
    %86 = vector.shape_cast %85 : vector<1x8x384xf32> to vector<8x384xf32>
    %cst_22 = arith.constant dense<0.000000e+00> : vector<8x384xf32>
    %87 = tpu.matmul %83, %4, %cst_22 {dimension_numbers = #tpu.dot_dimension_numbers<[1], [0], [0], [1], [0, 0, 1, 1], [], []>} : vector<8x128xf32>, vector<128x384xf32>, vector<8x384xf32> -> vector<8x384xf32>
    %88 = vector.broadcast %5 : vector<1x384xf32> to vector<8x384xf32>
    %89 = arith.addf %87, %88 : vector<8x384xf32>
    %90 = vector.extract_strided_slice %86 {offsets = [0, 0], sizes = [8, 128], strides = [1, 1]} : vector<8x384xf32> to vector<8x128xf32>
    %91 = vector.extract_strided_slice %89 {offsets = [0, 0], sizes = [8, 128], strides = [1, 1]} : vector<8x384xf32> to vector<8x128xf32>
    %92 = arith.addf %90, %91 : vector<8x128xf32>
    %93 = arith.negf %92 : vector<8x128xf32>
    %94 = math.exp %93 : vector<8x128xf32>
    %cst_23 = arith.constant 1.000000e+00 : f32
    %95 = vector.broadcast %cst_23 : f32 to vector<8x128xf32>
    %96 = arith.addf %95, %94 : vector<8x128xf32>
    %97 = arith.divf %95, %96 : vector<8x128xf32>
    %98 = vector.extract_strided_slice %86 {offsets = [0, 128], sizes = [8, 128], strides = [1, 1]} : vector<8x384xf32> to vector<8x128xf32>
    %99 = vector.extract_strided_slice %89 {offsets = [0, 128], sizes = [8, 128], strides = [1, 1]} : vector<8x384xf32> to vector<8x128xf32>
    %100 = arith.addf %98, %99 : vector<8x128xf32>
    %101 = arith.negf %100 : vector<8x128xf32>
    %102 = math.exp %101 : vector<8x128xf32>
    %cst_24 = arith.constant 1.000000e+00 : f32
    %103 = vector.broadcast %cst_24 : f32 to vector<8x128xf32>
    %104 = arith.addf %103, %102 : vector<8x128xf32>
    %105 = arith.divf %103, %104 : vector<8x128xf32>
    %106 = vector.extract_strided_slice %86 {offsets = [0, 256], sizes = [8, 128], strides = [1, 1]} : vector<8x384xf32> to vector<8x128xf32>
    %107 = vector.extract_strided_slice %89 {offsets = [0, 256], sizes = [8, 128], strides = [1, 1]} : vector<8x384xf32> to vector<8x128xf32>
    %108 = arith.mulf %97, %107 : vector<8x128xf32>
    %109 = arith.addf %106, %108 : vector<8x128xf32>
    %110 = math.tanh %109 : vector<8x128xf32>
    %cst_25 = arith.constant 1.000000e+00 : f32
    %111 = vector.broadcast %cst_25 : f32 to vector<8x128xf32>
    %112 = arith.subf %111, %105 : vector<8x128xf32>
    %113 = arith.mulf %112, %110 : vector<8x128xf32>
    %114 = arith.mulf %105, %83 : vector<8x128xf32>
    %115 = arith.addf %113, %114 : vector<8x128xf32>
    %116 = arith.addi %6, %c2_i32 : i32
    %117 = vector.broadcast %116 : i32 to vector<8x1xi32>
    %118 = arith.cmpi slt, %117, %3 : vector<8x1xi32>
    %119 = vector.shape_cast %118 : vector<8x1xi1> to vector<8x1xi1>
    %120 = vector.broadcast %119 : vector<8x1xi1> to vector<8x128xi1>
    %121 = arith.select %120, %115, %83 : vector<8x128xi1>, vector<8x128xf32>
    %c3_i32 = arith.constant 3 : i32
    %122 = arith.index_cast %c3_i32 : i32 to index
    %c0_26 = arith.constant 0 : index
    %c0_27 = arith.constant 0 : index
    %123 = vector.load %arg2[%122, %c0_26, %c0_27] : memref<8x8x384xf32, #tpu.memory_space<vmem>>, vector<1x8x384xf32>
    %124 = vector.shape_cast %123 : vector<1x8x384xf32> to vector<8x384xf32>
    %cst_28 = arith.constant dense<0.000000e+00> : vector<8x384xf32>
    %125 = tpu.matmul %121, %4, %cst_28 {dimension_numbers = #tpu.dot_dimension_numbers<[1], [0], [0], [1], [0, 0, 1, 1], [], []>} : vector<8x128xf32>, vector<128x384xf32>, vector<8x384xf32> -> vector<8x384xf32>
    %126 = vector.broadcast %5 : vector<1x384xf32> to vector<8x384xf32>
    %127 = arith.addf %125, %126 : vector<8x384xf32>
    %128 = vector.extract_strided_slice %124 {offsets = [0, 0], sizes = [8, 128], strides = [1, 1]} : vector<8x384xf32> to vector<8x128xf32>
    %129 = vector.extract_strided_slice %127 {offsets = [0, 0], sizes = [8, 128], strides = [1, 1]} : vector<8x384xf32> to vector<8x128xf32>
    %130 = arith.addf %128, %129 : vector<8x128xf32>
    %131 = arith.negf %130 : vector<8x128xf32>
    %132 = math.exp %131 : vector<8x128xf32>
    %cst_29 = arith.constant 1.000000e+00 : f32
    %133 = vector.broadcast %cst_29 : f32 to vector<8x128xf32>
    %134 = arith.addf %133, %132 : vector<8x128xf32>
    %135 = arith.divf %133, %134 : vector<8x128xf32>
    %136 = vector.extract_strided_slice %124 {offsets = [0, 128], sizes = [8, 128], strides = [1, 1]} : vector<8x384xf32> to vector<8x128xf32>
    %137 = vector.extract_strided_slice %127 {offsets = [0, 128], sizes = [8, 128], strides = [1, 1]} : vector<8x384xf32> to vector<8x128xf32>
    %138 = arith.addf %136, %137 : vector<8x128xf32>
    %139 = arith.negf %138 : vector<8x128xf32>
    %140 = math.exp %139 : vector<8x128xf32>
    %cst_30 = arith.constant 1.000000e+00 : f32
    %141 = vector.broadcast %cst_30 : f32 to vector<8x128xf32>
    %142 = arith.addf %141, %140 : vector<8x128xf32>
    %143 = arith.divf %141, %142 : vector<8x128xf32>
    %144 = vector.extract_strided_slice %124 {offsets = [0, 256], sizes = [8, 128], strides = [1, 1]} : vector<8x384xf32> to vector<8x128xf32>
    %145 = vector.extract_strided_slice %127 {offsets = [0, 256], sizes = [8, 128], strides = [1, 1]} : vector<8x384xf32> to vector<8x128xf32>
    %146 = arith.mulf %135, %145 : vector<8x128xf32>
    %147 = arith.addf %144, %146 : vector<8x128xf32>
    %148 = math.tanh %147 : vector<8x128xf32>
    %cst_31 = arith.constant 1.000000e+00 : f32
    %149 = vector.broadcast %cst_31 : f32 to vector<8x128xf32>
    %150 = arith.subf %149, %143 : vector<8x128xf32>
    %151 = arith.mulf %150, %148 : vector<8x128xf32>
    %152 = arith.mulf %143, %121 : vector<8x128xf32>
    %153 = arith.addf %151, %152 : vector<8x128xf32>
    %154 = arith.addi %6, %c3_i32 : i32
    %155 = vector.broadcast %154 : i32 to vector<8x1xi32>
    %156 = arith.cmpi slt, %155, %3 : vector<8x1xi32>
    %157 = vector.shape_cast %156 : vector<8x1xi1> to vector<8x1xi1>
    %158 = vector.broadcast %157 : vector<8x1xi1> to vector<8x128xi1>
    %159 = arith.select %158, %153, %121 : vector<8x128xi1>, vector<8x128xf32>
    %c4_i32 = arith.constant 4 : i32
    %160 = arith.index_cast %c4_i32 : i32 to index
    %c0_32 = arith.constant 0 : index
    %c0_33 = arith.constant 0 : index
    %161 = vector.load %arg2[%160, %c0_32, %c0_33] : memref<8x8x384xf32, #tpu.memory_space<vmem>>, vector<1x8x384xf32>
    %162 = vector.shape_cast %161 : vector<1x8x384xf32> to vector<8x384xf32>
    %cst_34 = arith.constant dense<0.000000e+00> : vector<8x384xf32>
    %163 = tpu.matmul %159, %4, %cst_34 {dimension_numbers = #tpu.dot_dimension_numbers<[1], [0], [0], [1], [0, 0, 1, 1], [], []>} : vector<8x128xf32>, vector<128x384xf32>, vector<8x384xf32> -> vector<8x384xf32>
    %164 = vector.broadcast %5 : vector<1x384xf32> to vector<8x384xf32>
    %165 = arith.addf %163, %164 : vector<8x384xf32>
    %166 = vector.extract_strided_slice %162 {offsets = [0, 0], sizes = [8, 128], strides = [1, 1]} : vector<8x384xf32> to vector<8x128xf32>
    %167 = vector.extract_strided_slice %165 {offsets = [0, 0], sizes = [8, 128], strides = [1, 1]} : vector<8x384xf32> to vector<8x128xf32>
    %168 = arith.addf %166, %167 : vector<8x128xf32>
    %169 = arith.negf %168 : vector<8x128xf32>
    %170 = math.exp %169 : vector<8x128xf32>
    %cst_35 = arith.constant 1.000000e+00 : f32
    %171 = vector.broadcast %cst_35 : f32 to vector<8x128xf32>
    %172 = arith.addf %171, %170 : vector<8x128xf32>
    %173 = arith.divf %171, %172 : vector<8x128xf32>
    %174 = vector.extract_strided_slice %162 {offsets = [0, 128], sizes = [8, 128], strides = [1, 1]} : vector<8x384xf32> to vector<8x128xf32>
    %175 = vector.extract_strided_slice %165 {offsets = [0, 128], sizes = [8, 128], strides = [1, 1]} : vector<8x384xf32> to vector<8x128xf32>
    %176 = arith.addf %174, %175 : vector<8x128xf32>
    %177 = arith.negf %176 : vector<8x128xf32>
    %178 = math.exp %177 : vector<8x128xf32>
    %cst_36 = arith.constant 1.000000e+00 : f32
    %179 = vector.broadcast %cst_36 : f32 to vector<8x128xf32>
    %180 = arith.addf %179, %178 : vector<8x128xf32>
    %181 = arith.divf %179, %180 : vector<8x128xf32>
    %182 = vector.extract_strided_slice %162 {offsets = [0, 256], sizes = [8, 128], strides = [1, 1]} : vector<8x384xf32> to vector<8x128xf32>
    %183 = vector.extract_strided_slice %165 {offsets = [0, 256], sizes = [8, 128], strides = [1, 1]} : vector<8x384xf32> to vector<8x128xf32>
    %184 = arith.mulf %173, %183 : vector<8x128xf32>
    %185 = arith.addf %182, %184 : vector<8x128xf32>
    %186 = math.tanh %185 : vector<8x128xf32>
    %cst_37 = arith.constant 1.000000e+00 : f32
    %187 = vector.broadcast %cst_37 : f32 to vector<8x128xf32>
    %188 = arith.subf %187, %181 : vector<8x128xf32>
    %189 = arith.mulf %188, %186 : vector<8x128xf32>
    %190 = arith.mulf %181, %159 : vector<8x128xf32>
    %191 = arith.addf %189, %190 : vector<8x128xf32>
    %192 = arith.addi %6, %c4_i32 : i32
    %193 = vector.broadcast %192 : i32 to vector<8x1xi32>
    %194 = arith.cmpi slt, %193, %3 : vector<8x1xi32>
    %195 = vector.shape_cast %194 : vector<8x1xi1> to vector<8x1xi1>
    %196 = vector.broadcast %195 : vector<8x1xi1> to vector<8x128xi1>
    %197 = arith.select %196, %191, %159 : vector<8x128xi1>, vector<8x128xf32>
    %c5_i32 = arith.constant 5 : i32
    %198 = arith.index_cast %c5_i32 : i32 to index
    %c0_38 = arith.constant 0 : index
    %c0_39 = arith.constant 0 : index
    %199 = vector.load %arg2[%198, %c0_38, %c0_39] : memref<8x8x384xf32, #tpu.memory_space<vmem>>, vector<1x8x384xf32>
    %200 = vector.shape_cast %199 : vector<1x8x384xf32> to vector<8x384xf32>
    %cst_40 = arith.constant dense<0.000000e+00> : vector<8x384xf32>
    %201 = tpu.matmul %197, %4, %cst_40 {dimension_numbers = #tpu.dot_dimension_numbers<[1], [0], [0], [1], [0, 0, 1, 1], [], []>} : vector<8x128xf32>, vector<128x384xf32>, vector<8x384xf32> -> vector<8x384xf32>
    %202 = vector.broadcast %5 : vector<1x384xf32> to vector<8x384xf32>
    %203 = arith.addf %201, %202 : vector<8x384xf32>
    %204 = vector.extract_strided_slice %200 {offsets = [0, 0], sizes = [8, 128], strides = [1, 1]} : vector<8x384xf32> to vector<8x128xf32>
    %205 = vector.extract_strided_slice %203 {offsets = [0, 0], sizes = [8, 128], strides = [1, 1]} : vector<8x384xf32> to vector<8x128xf32>
    %206 = arith.addf %204, %205 : vector<8x128xf32>
    %207 = arith.negf %206 : vector<8x128xf32>
    %208 = math.exp %207 : vector<8x128xf32>
    %cst_41 = arith.constant 1.000000e+00 : f32
    %209 = vector.broadcast %cst_41 : f32 to vector<8x128xf32>
    %210 = arith.addf %209, %208 : vector<8x128xf32>
    %211 = arith.divf %209, %210 : vector<8x128xf32>
    %212 = vector.extract_strided_slice %200 {offsets = [0, 128], sizes = [8, 128], strides = [1, 1]} : vector<8x384xf32> to vector<8x128xf32>
    %213 = vector.extract_strided_slice %203 {offsets = [0, 128], sizes = [8, 128], strides = [1, 1]} : vector<8x384xf32> to vector<8x128xf32>
    %214 = arith.addf %212, %213 : vector<8x128xf32>
    %215 = arith.negf %214 : vector<8x128xf32>
    %216 = math.exp %215 : vector<8x128xf32>
    %cst_42 = arith.constant 1.000000e+00 : f32
    %217 = vector.broadcast %cst_42 : f32 to vector<8x128xf32>
    %218 = arith.addf %217, %216 : vector<8x128xf32>
    %219 = arith.divf %217, %218 : vector<8x128xf32>
    %220 = vector.extract_strided_slice %200 {offsets = [0, 256], sizes = [8, 128], strides = [1, 1]} : vector<8x384xf32> to vector<8x128xf32>
    %221 = vector.extract_strided_slice %203 {offsets = [0, 256], sizes = [8, 128], strides = [1, 1]} : vector<8x384xf32> to vector<8x128xf32>
    %222 = arith.mulf %211, %221 : vector<8x128xf32>
    %223 = arith.addf %220, %222 : vector<8x128xf32>
    %224 = math.tanh %223 : vector<8x128xf32>
    %cst_43 = arith.constant 1.000000e+00 : f32
    %225 = vector.broadcast %cst_43 : f32 to vector<8x128xf32>
    %226 = arith.subf %225, %219 : vector<8x128xf32>
    %227 = arith.mulf %226, %224 : vector<8x128xf32>
    %228 = arith.mulf %219, %197 : vector<8x128xf32>
    %229 = arith.addf %227, %228 : vector<8x128xf32>
    %230 = arith.addi %6, %c5_i32 : i32
    %231 = vector.broadcast %230 : i32 to vector<8x1xi32>
    %232 = arith.cmpi slt, %231, %3 : vector<8x1xi32>
    %233 = vector.shape_cast %232 : vector<8x1xi1> to vector<8x1xi1>
    %234 = vector.broadcast %233 : vector<8x1xi1> to vector<8x128xi1>
    %235 = arith.select %234, %229, %197 : vector<8x128xi1>, vector<8x128xf32>
    %c6_i32 = arith.constant 6 : i32
    %236 = arith.index_cast %c6_i32 : i32 to index
    %c0_44 = arith.constant 0 : index
    %c0_45 = arith.constant 0 : index
    %237 = vector.load %arg2[%236, %c0_44, %c0_45] : memref<8x8x384xf32, #tpu.memory_space<vmem>>, vector<1x8x384xf32>
    %238 = vector.shape_cast %237 : vector<1x8x384xf32> to vector<8x384xf32>
    %cst_46 = arith.constant dense<0.000000e+00> : vector<8x384xf32>
    %239 = tpu.matmul %235, %4, %cst_46 {dimension_numbers = #tpu.dot_dimension_numbers<[1], [0], [0], [1], [0, 0, 1, 1], [], []>} : vector<8x128xf32>, vector<128x384xf32>, vector<8x384xf32> -> vector<8x384xf32>
    %240 = vector.broadcast %5 : vector<1x384xf32> to vector<8x384xf32>
    %241 = arith.addf %239, %240 : vector<8x384xf32>
    %242 = vector.extract_strided_slice %238 {offsets = [0, 0], sizes = [8, 128], strides = [1, 1]} : vector<8x384xf32> to vector<8x128xf32>
    %243 = vector.extract_strided_slice %241 {offsets = [0, 0], sizes = [8, 128], strides = [1, 1]} : vector<8x384xf32> to vector<8x128xf32>
    %244 = arith.addf %242, %243 : vector<8x128xf32>
    %245 = arith.negf %244 : vector<8x128xf32>
    %246 = math.exp %245 : vector<8x128xf32>
    %cst_47 = arith.constant 1.000000e+00 : f32
    %247 = vector.broadcast %cst_47 : f32 to vector<8x128xf32>
    %248 = arith.addf %247, %246 : vector<8x128xf32>
    %249 = arith.divf %247, %248 : vector<8x128xf32>
    %250 = vector.extract_strided_slice %238 {offsets = [0, 128], sizes = [8, 128], strides = [1, 1]} : vector<8x384xf32> to vector<8x128xf32>
    %251 = vector.extract_strided_slice %241 {offsets = [0, 128], sizes = [8, 128], strides = [1, 1]} : vector<8x384xf32> to vector<8x128xf32>
    %252 = arith.addf %250, %251 : vector<8x128xf32>
    %253 = arith.negf %252 : vector<8x128xf32>
    %254 = math.exp %253 : vector<8x128xf32>
    %cst_48 = arith.constant 1.000000e+00 : f32
    %255 = vector.broadcast %cst_48 : f32 to vector<8x128xf32>
    %256 = arith.addf %255, %254 : vector<8x128xf32>
    %257 = arith.divf %255, %256 : vector<8x128xf32>
    %258 = vector.extract_strided_slice %238 {offsets = [0, 256], sizes = [8, 128], strides = [1, 1]} : vector<8x384xf32> to vector<8x128xf32>
    %259 = vector.extract_strided_slice %241 {offsets = [0, 256], sizes = [8, 128], strides = [1, 1]} : vector<8x384xf32> to vector<8x128xf32>
    %260 = arith.mulf %249, %259 : vector<8x128xf32>
    %261 = arith.addf %258, %260 : vector<8x128xf32>
    %262 = math.tanh %261 : vector<8x128xf32>
    %cst_49 = arith.constant 1.000000e+00 : f32
    %263 = vector.broadcast %cst_49 : f32 to vector<8x128xf32>
    %264 = arith.subf %263, %257 : vector<8x128xf32>
    %265 = arith.mulf %264, %262 : vector<8x128xf32>
    %266 = arith.mulf %257, %235 : vector<8x128xf32>
    %267 = arith.addf %265, %266 : vector<8x128xf32>
    %268 = arith.addi %6, %c6_i32 : i32
    %269 = vector.broadcast %268 : i32 to vector<8x1xi32>
    %270 = arith.cmpi slt, %269, %3 : vector<8x1xi32>
    %271 = vector.shape_cast %270 : vector<8x1xi1> to vector<8x1xi1>
    %272 = vector.broadcast %271 : vector<8x1xi1> to vector<8x128xi1>
    %273 = arith.select %272, %267, %235 : vector<8x128xi1>, vector<8x128xf32>
    %c7_i32 = arith.constant 7 : i32
    %274 = arith.index_cast %c7_i32 : i32 to index
    %c0_50 = arith.constant 0 : index
    %c0_51 = arith.constant 0 : index
    %275 = vector.load %arg2[%274, %c0_50, %c0_51] : memref<8x8x384xf32, #tpu.memory_space<vmem>>, vector<1x8x384xf32>
    %276 = vector.shape_cast %275 : vector<1x8x384xf32> to vector<8x384xf32>
    %cst_52 = arith.constant dense<0.000000e+00> : vector<8x384xf32>
    %277 = tpu.matmul %273, %4, %cst_52 {dimension_numbers = #tpu.dot_dimension_numbers<[1], [0], [0], [1], [0, 0, 1, 1], [], []>} : vector<8x128xf32>, vector<128x384xf32>, vector<8x384xf32> -> vector<8x384xf32>
    %278 = vector.broadcast %5 : vector<1x384xf32> to vector<8x384xf32>
    %279 = arith.addf %277, %278 : vector<8x384xf32>
    %280 = vector.extract_strided_slice %276 {offsets = [0, 0], sizes = [8, 128], strides = [1, 1]} : vector<8x384xf32> to vector<8x128xf32>
    %281 = vector.extract_strided_slice %279 {offsets = [0, 0], sizes = [8, 128], strides = [1, 1]} : vector<8x384xf32> to vector<8x128xf32>
    %282 = arith.addf %280, %281 : vector<8x128xf32>
    %283 = arith.negf %282 : vector<8x128xf32>
    %284 = math.exp %283 : vector<8x128xf32>
    %cst_53 = arith.constant 1.000000e+00 : f32
    %285 = vector.broadcast %cst_53 : f32 to vector<8x128xf32>
    %286 = arith.addf %285, %284 : vector<8x128xf32>
    %287 = arith.divf %285, %286 : vector<8x128xf32>
    %288 = vector.extract_strided_slice %276 {offsets = [0, 128], sizes = [8, 128], strides = [1, 1]} : vector<8x384xf32> to vector<8x128xf32>
    %289 = vector.extract_strided_slice %279 {offsets = [0, 128], sizes = [8, 128], strides = [1, 1]} : vector<8x384xf32> to vector<8x128xf32>
    %290 = arith.addf %288, %289 : vector<8x128xf32>
    %291 = arith.negf %290 : vector<8x128xf32>
    %292 = math.exp %291 : vector<8x128xf32>
    %cst_54 = arith.constant 1.000000e+00 : f32
    %293 = vector.broadcast %cst_54 : f32 to vector<8x128xf32>
    %294 = arith.addf %293, %292 : vector<8x128xf32>
    %295 = arith.divf %293, %294 : vector<8x128xf32>
    %296 = vector.extract_strided_slice %276 {offsets = [0, 256], sizes = [8, 128], strides = [1, 1]} : vector<8x384xf32> to vector<8x128xf32>
    %297 = vector.extract_strided_slice %279 {offsets = [0, 256], sizes = [8, 128], strides = [1, 1]} : vector<8x384xf32> to vector<8x128xf32>
    %298 = arith.mulf %287, %297 : vector<8x128xf32>
    %299 = arith.addf %296, %298 : vector<8x128xf32>
    %300 = math.tanh %299 : vector<8x128xf32>
    %cst_55 = arith.constant 1.000000e+00 : f32
    %301 = vector.broadcast %cst_55 : f32 to vector<8x128xf32>
    %302 = arith.subf %301, %295 : vector<8x128xf32>
    %303 = arith.mulf %302, %300 : vector<8x128xf32>
    %304 = arith.mulf %295, %273 : vector<8x128xf32>
    %305 = arith.addf %303, %304 : vector<8x128xf32>
    %306 = arith.addi %6, %c7_i32 : i32
    %307 = vector.broadcast %306 : i32 to vector<8x1xi32>
    %308 = arith.cmpi slt, %307, %3 : vector<8x1xi32>
    %309 = vector.shape_cast %308 : vector<8x1xi1> to vector<8x1xi1>
    %310 = vector.broadcast %309 : vector<8x1xi1> to vector<8x128xi1>
    %311 = arith.select %310, %305, %273 : vector<8x128xi1>, vector<8x128xf32>
    %c8_i32_56 = arith.constant 8 : i32
    %c0_57 = arith.constant 0 : index
    %c0_58 = arith.constant 0 : index
    %312 = vector.load %arg5[%c0_57, %c0_58] : memref<8x128xf32, #tpu.memory_space<vmem>>, vector<8x128xf32>
    tpu.vector_store %arg5[%c0_57, %c0_58], %311 {strides = array<i32>} : memref<8x128xf32, #tpu.memory_space<vmem>>, vector<8x128xf32>,
    return
  }
  func.func @transform_0(%arg0: i32) -> (i32, i32) {
    %c0_i32 = arith.constant 0 : i32
    %c0_i32_0 = arith.constant 0 : i32
    %c0_i32_1 = arith.constant 0 : i32
    return %c0_i32, %c0_i32_0 : i32, i32
  }
  func.func @transform_1(%arg0: i32) -> (i32, i32, i32) {
    %c0_i32 = arith.constant 0 : i32
    %c0_i32_0 = arith.constant 0 : i32
    %c0_i32_1 = arith.constant 0 : i32
    return %arg0, %c0_i32, %c0_i32_0 : i32, i32, i32
  }
  func.func @transform_2(%arg0: i32) -> (i32, i32) {
    %c0_i32 = arith.constant 0 : i32
    %c0_i32_0 = arith.constant 0 : i32
    %c0_i32_1 = arith.constant 0 : i32
    return %c0_i32, %c0_i32_0 : i32, i32
  }
  func.func @transform_3(%arg0: i32) -> (i32, i32) {
    %c0_i32 = arith.constant 0 : i32
    %c0_i32_0 = arith.constant 0 : i32
    %c0_i32_1 = arith.constant 0 : i32
    return %c0_i32, %c0_i32_0 : i32, i32
  }
  func.func @transform_4(%arg0: i32) -> (i32, i32) {
    %c0_i32 = arith.constant 0 : i32
    %c0_i32_0 = arith.constant 0 : i32
    %c0_i32_1 = arith.constant 0 : i32
    return %c0_i32, %c0_i32_0 : i32, i32
  }
}

</mosaic_0001>

<llo_original>
// kernel: fast_packed_forward.1
$region0: #{fast_packed_forward.1}
  #allocation0 [shape = 'u32[]', space=smem, size = 0x4, offset = 0x4, fixed_abs, tag = 'smem constant byte address 0x4 - core index']
  #allocation1 [shape = 'u32[144,128]{1,0:T(1,128)}', space=vmem, size = 0x12000, scoped, tag = 'internal scratch']
  %s0 = inlined_call_operand.vmem [shape: s32[8,1], index: 0, kind: input, shape index: {}]
  %s1 = inlined_call_operand.vmem [shape: f32[8,8,384], index: 1, kind: input, shape index: {}]
  %s2 = inlined_call_operand.vmem [shape: f32[128,384], index: 2, kind: input, shape index: {}]
  %s3 = inlined_call_operand.vmem [shape: f32[1,384], index: 3, kind: input, shape index: {}]
  %s4 = inlined_call_operand.vmem [shape: f32[8,128], index: 4, kind: output, shape index: {}]
  %s5 = sld [smem:[#allocation0]]
  $region30: #{fast_packed_forward.1} parent=0
    _
  %s7 = ssub.s32 1, %s5
  %s8 = scalar_select 0, %s7, %s5
  // Predicated region
  $region2: #{fast_packed_forward.1} parent=0 // pred_check
    _
  $region3: #{fast_packed_forward.1} parent=0 // pred_check_branch
    %10 = sbr.rel (0) target = $region5
  $region4: #{fast_packed_forward.1} parent=0 // pred_region
    _
  $region5: #{fast_packed_forward.1} parent=0 // pred_fallthru
    _
  // Predicated region
  $region6: #{fast_packed_forward.1} parent=0 // pred_check
    _
  $region7: #{fast_packed_forward.1} parent=0 // pred_check_branch
    %12 = sbr.rel (0) target = $region9
  $region8: #{fast_packed_forward.1} parent=0 // pred_region
    _
  $region9: #{fast_packed_forward.1} parent=0 // pred_fallthru
    _
  // Predicated region
  $region10: #{fast_packed_forward.1} parent=0 // pred_check
    _
  $region11: #{fast_packed_forward.1} parent=0 // pred_check_branch
    %14 = sbr.rel (0) target = $region13
  $region12: #{fast_packed_forward.1} parent=0 // pred_region
    _
  $region13: #{fast_packed_forward.1} parent=0 // pred_fallthru
    _
  // Predicated region
  $region14: #{fast_packed_forward.1} parent=0 // pred_check
    _
  $region15: #{fast_packed_forward.1} parent=0 // pred_check_branch
    %16 = sbr.rel (0) target = $region17
  $region16: #{fast_packed_forward.1} parent=0 // pred_region
    _
  $region17: #{fast_packed_forward.1} parent=0 // pred_fallthru
    _
  %p17 = scmp.eq.s32.totalorder 0, 0
  // Predicated region
  $region18: #{fast_packed_forward.1} parent=0 // pred_check
    %p18 = pneg %p17
  $region19: #{fast_packed_forward.1} parent=0 // pred_check_branch
    %20 = sbr.rel (%p18) target = $region21
  $region20: #{fast_packed_forward.1} parent=0 // pred_region
    %21 = vst [vmem:[%s4] sm:$0xff] 0.0
  $region21: #{fast_packed_forward.1} parent=0 // pred_fallthru
    _
  %v22 = vld [vmem:[%s0] sm:$0xff]
  %v23 = vld [vmem:[%s2] sm:$0xff]
  %v24 = vld [vmem:[%s2 + $0x8] sm:$0xff]
  %v25 = vld [vmem:[%s2 + $0x10] sm:$0xff]
  %v26 = vld [vmem:[%s2 + $0x18] sm:$0xff]
  %v27 = vld [vmem:[%s2 + $0x20] sm:$0xff]
  %v28 = vld [vmem:[%s2 + $0x28] sm:$0xff]
  %v29 = vld [vmem:[%s2 + $0x30] sm:$0xff]
  %v30 = vld [vmem:[%s2 + $0x38] sm:$0xff]
  %v31 = vld [vmem:[%s2 + $0x40] sm:$0xff]
  %v32 = vld [vmem:[%s2 + $0x48] sm:$0xff]
  %v33 = vld [vmem:[%s2 + $0x50] sm:$0xff]
  %v34 = vld [vmem:[%s2 + $0x58] sm:$0xff]
  %v35 = vld [vmem:[%s2 + $0x60] sm:$0xff]
  %v36 = vld [vmem:[%s2 + $0x68] sm:$0xff]
  %v37 = vld [vmem:[%s2 + $0x70] sm:$0xff]
  %v38 = vld [vmem:[%s2 + $0x78] sm:$0xff]
  %v39 = vld [vmem:[%s2 + $0x80] sm:$0xff]
  %v40 = vld [vmem:[%s2 + $0x88] sm:$0xff]
  %v41 = vld [vmem:[%s2 + $0x90] sm:$0xff]
  %v42 = vld [vmem:[%s2 + $0x98] sm:$0xff]
  %v43 = vld [vmem:[%s2 + $0xa0] sm:$0xff]
  %v44 = vld [vmem:[%s2 + $0xa8] sm:$0xff]
  %v45 = vld [vmem:[%s2 + $0xb0] sm:$0xff]
  %v46 = vld [vmem:[%s2 + $0xb8] sm:$0xff]
  %v47 = vld [vmem:[%s2 + $0xc0] sm:$0xff]
  %v48 = vld [vmem:[%s2 + $0xc8] sm:$0xff]
  %v49 = vld [vmem:[%s2 + $0xd0] sm:$0xff]
  %v50 = vld [vmem:[%s2 + $0xd8] sm:$0xff]
  %v51 = vld [vmem:[%s2 + $0xe0] sm:$0xff]
  %v52 = vld [vmem:[%s2 + $0xe8] sm:$0xff]
  %v53 = vld [vmem:[%s2 + $0xf0] sm:$0xff]
  %v54 = vld [vmem:[%s2 + $0xf8] sm:$0xff]
  %v55 = vld [vmem:[%s2 + $0x100] sm:$0xff]
  %v56 = vld [vmem:[%s2 + $0x108] sm:$0xff]
  %v57 = vld [vmem:[%s2 + $0x110] sm:$0xff]
  %v58 = vld [vmem:[%s2 + $0x118] sm:$0xff]
  %v59 = vld [vmem:[%s2 + $0x120] sm:$0xff]
  %v60 = vld [vmem:[%s2 + $0x128] sm:$0xff]
  %v61 = vld [vmem:[%s2 + $0x130] sm:$0xff]
  %v62 = vld [vmem:[%s2 + $0x138] sm:$0xff]
  %v63 = vld [vmem:[%s2 + $0x140] sm:$0xff]
  %v64 = vld [vmem:[%s2 + $0x148] sm:$0xff]
  %v65 = vld [vmem:[%s2 + $0x150] sm:$0xff]
  %v66 = vld [vmem:[%s2 + $0x158] sm:$0xff]
  %v67 = vld [vmem:[%s2 + $0x160] sm:$0xff]
  %v68 = vld [vmem:[%s2 + $0x168] sm:$0xff]
  %v69 = vld [vmem:[%s2 + $0x170] sm:$0xff]
  %v70 = vld [vmem:[%s2 + $0x178] sm:$0xff]
  %v71 = vld [vmem:[%s3] sm:$0x7]
  %s72 = smul.u32 0, 8
  %v73 = vld [vmem:[%s4] sm:$0xff]
  %v74 = vld [vmem:[%s1] sm:$0xff]
  %v75 = vld [vmem:[%s1 + $0x8] sm:$0xff]
  %v76 = vld [vmem:[%s1 + $0x10] sm:$0xff]
  %v78 = vlaneseq
  %v79 = vshrl.u32 %v78, 7
  %v80 = vsub.s32 0, %v79
  %v81 = vrot.slane %v71, %v80
  %v82 = vlaneseq
  %v83 = vshrl.u32 %v82, 7
  %v84 = vsub.s32 1, %v83
  %v85 = vrot.slane %v71, %v84
  %v86 = vlaneseq
  %v87 = vshrl.u32 %v86, 7
  %v88 = vsub.s32 2, %v87
  %v89 = vrot.slane %v71, %v88
  %93 = vmatprep.subr.mxu0 %v69
  %94 = vmatpush1.msra.mxu0 %v68
  %95 = vmatprep.subr.mxu0 %v66
  %96 = vmatpush1.msra.mxu0 %v65
  %97 = vmatprep.subr.mxu0 %v63
  %98 = vmatpush1.msra.mxu0 %v62
  %99 = vmatprep.subr.mxu0 %v60
  %100 = vmatpush1.msra.mxu0 %v59
  %101 = vmatprep.subr.mxu0 %v57
  %102 = vmatpush1.msra.mxu0 %v56
  %103 = vmatprep.subr.mxu0 %v54
  %104 = vmatpush1.msra.mxu0 %v53
  %105 = vmatprep.subr.mxu0 %v51
  %106 = vmatpush1.msra.mxu0 %v50
  %107 = vmatprep.subr.mxu0 %v48
  %108 = vmatpush1.msra.mxu0 %v47
  %109 = vmatprep.subr.mxu0 %v45
  %110 = vmatpush1.msra.mxu0 %v44
  %111 = vmatprep.subr.mxu0 %v42
  %112 = vmatpush1.msra.mxu0 %v41
  %113 = vmatprep.subr.mxu0 %v39
  %114 = vmatpush1.msra.mxu0 %v38
  %115 = vmatprep.subr.mxu0 %v36
  %116 = vmatpush1.msra.mxu0 %v35
  %117 = vmatprep.subr.mxu0 %v33
  %118 = vmatpush1.msra.mxu0 %v32
  %119 = vmatprep.subr.mxu0 %v30
  %120 = vmatpush1.msra.mxu0 %v29
  %121 = vmatprep.subr.mxu0 %v27
  %122 = vmatpush1.msra.mxu0 %v26
  %123 = vmatprep.subr.mxu0 %v24
  %124 = vmatpush1.msra.mxu0 %v23
  %125 = vmatprep.subr.mxu0 0.0
  %126 = vmatpush2.msra.mxu0 0.0
  %127 = vmatprep.subr.mxu0 0.0
  %128 = vmatpush2.msra.mxu0 0.0
  %129 = vmatprep.subr.mxu0 0.0
  %130 = vmatpush2.msra.mxu0 0.0
  %131 = vmatprep.subr.mxu0 0.0
  %132 = vmatpush2.msra.mxu0 0.0
  %133 = vmatprep.subr.mxu0 0.0
  %134 = vmatpush2.msra.mxu0 0.0
  %135 = vmatprep.subr.mxu0 0.0
  %136 = vmatpush2.msra.mxu0 0.0
  %137 = vmatprep.subr.mxu0 0.0
  %138 = vmatpush2.msra.mxu0 0.0
  %139 = vmatprep.subr.mxu0 0.0
  %140 = vmatpush2.msra.mxu0 0.0
  %141 = vmatprep.subr.mxu0 0.0
  %142 = vmatpush2.msra.mxu0 0.0
  %143 = vmatprep.subr.mxu0 0.0
  %144 = vmatpush2.msra.mxu0 0.0
  %145 = vmatprep.subr.mxu0 0.0
  %146 = vmatpush2.msra.mxu0 0.0
  %147 = vmatprep.subr.mxu0 0.0
  %148 = vmatpush2.msra.mxu0 0.0
  %149 = vmatprep.subr.mxu0 0.0
  %150 = vmatpush2.msra.mxu0 0.0
  %151 = vmatprep.subr.mxu0 0.0
  %152 = vmatpush2.msra.mxu0 0.0
  %153 = vmatprep.subr.mxu0 0.0
  %154 = vmatpush2.msra.mxu0 0.0
  %155 = vmatprep.subr.mxu0 0.0
  %156 = vmatpush2.msra.mxu0 0.0
  %157 = vmatprep.mubr.f32.mxu0 0.0
  %158 = vmatmul.mubr.f32.gmra.mxu0 %v73
  %v159 = vpop.f32.mrf.mxu0
  %v160 = vadd.f32 %v81, %v159
  %v161 = vpop.f32.mrf.mxu0
  %v162 = vadd.f32 %v85, %v161
  %163 = vdwg.mxu0
  %164 = vmatprep.subr.mxu0 0.0
  %165 = vmatpush1.msra.mxu0 %v70
  %166 = vmatprep.subr.mxu0 0.0
  %167 = vmatpush1.msra.mxu0 %v67
  %168 = vmatprep.subr.mxu0 0.0
  %169 = vmatpush1.msra.mxu0 %v64
  %170 = vmatprep.subr.mxu0 0.0
  %171 = vmatpush1.msra.mxu0 %v61
  %172 = vmatprep.subr.mxu0 0.0
  %173 = vmatpush1.msra.mxu0 %v58
  %174 = vmatprep.subr.mxu0 0.0
  %175 = vmatpush1.msra.mxu0 %v55
  %176 = vmatprep.subr.mxu0 0.0
  %177 = vmatpush1.msra.mxu0 %v52
  %178 = vmatprep.subr.mxu0 0.0
  %179 = vmatpush1.msra.mxu0 %v49
  %180 = vmatprep.subr.mxu0 0.0
  %181 = vmatpush1.msra.mxu0 %v46
  %182 = vmatprep.subr.mxu0 0.0
  %183 = vmatpush1.msra.mxu0 %v43
  %184 = vmatprep.subr.mxu0 0.0
  %185 = vmatpush1.msra.mxu0 %v40
  %186 = vmatprep.subr.mxu0 0.0
  %187 = vmatpush1.msra.mxu0 %v37
  %188 = vmatprep.subr.mxu0 0.0
  %189 = vmatpush1.msra.mxu0 %v34
  %190 = vmatprep.subr.mxu0 0.0
  %191 = vmatpush1.msra.mxu0 %v31
  %192 = vmatprep.subr.mxu0 0.0
  %193 = vmatpush1.msra.mxu0 %v28
  %194 = vmatprep.subr.mxu0 0.0
  %195 = vmatpush1.msra.mxu0 %v25
  %196 = vmatprep.subr.mxu0 0.0
  %197 = vmatpush2.msra.mxu0 0.0
  %198 = vmatprep.subr.mxu0 0.0
  %199 = vmatpush2.msra.mxu0 0.0
  %200 = vmatprep.subr.mxu0 0.0
  %201 = vmatpush2.msra.mxu0 0.0
  %202 = vmatprep.subr.mxu0 0.0
  %203 = vmatpush2.msra.mxu0 0.0
  %204 = vmatprep.subr.mxu0 0.0
  %205 = vmatpush2.msra.mxu0 0.0
  %206 = vmatprep.subr.mxu0 0.0
  %207 = vmatpush2.msra.mxu0 0.0
  %208 = vmatprep.subr.mxu0 0.0
  %209 = vmatpush2.msra.mxu0 0.0
  %210 = vmatprep.subr.mxu0 0.0
  %211 = vmatpush2.msra.mxu0 0.0
  %212 = vmatprep.subr.mxu0 0.0
  %213 = vmatpush2.msra.mxu0 0.0
  %214 = vmatprep.subr.mxu0 0.0
  %215 = vmatpush2.msra.mxu0 0.0
  %216 = vmatprep.subr.mxu0 0.0
  %217 = vmatpush2.msra.mxu0 0.0
  %218 = vmatprep.subr.mxu0 0.0
  %219 = vmatpush2.msra.mxu0 0.0
  %220 = vmatprep.subr.mxu0 0.0
  %221 = vmatpush2.msra.mxu0 0.0
  %222 = vmatprep.subr.mxu0 0.0
  %223 = vmatpush2.msra.mxu0 0.0
  %224 = vmatprep.subr.mxu0 0.0
  %225 = vmatpush2.msra.mxu0 0.0
  %226 = vmatprep.subr.mxu0 0.0
  %227 = vmatpush2.msra.mxu0 0.0
  %228 = vmatprep.mubr.f32.mxu0 0.0
  %229 = vmatmul.mubr.f32.gmra.mxu0 %v73
  %v230 = vpop.f32.mrf.mxu0
  %v231 = vadd.f32 %v89, %v230
  %v232 = vpop.f32.mrf.mxu0
  %233 = vdwg.mxu0
  %v234 = vadd.f32 %v74, %v160
  %v235 = vxor.u32 %v234, 2147483648
  %v236 = vmul.f32 %v235, 1.442695
  %v237 = vpow.pop %v236
  %v238 = vadd.f32 %v237, 1.0
  %v239 = vrcp.pop %v238
  %v240 = vmul.f32 1.0, %v239
  %v241 = vadd.f32 %v75, %v162
  %v242 = vxor.u32 %v241, 2147483648
  %v243 = vmul.f32 %v242, 1.442695
  %v244 = vpow.pop %v243
  %v245 = vadd.f32 %v244, 1.0
  %v246 = vrcp.pop %v245
  %v247 = vmul.f32 1.0, %v246
  %v248 = vmul.f32 %v240, %v231
  %v249 = vadd.f32 %v76, %v248
  %v250 = vtanh.pop %v249
  %v251 = vsub.f32 1.0, %v247
  %v252 = vmul.f32 %v251, %v250
  %v253 = vmul.f32 %v247, %v73
  %v254 = vadd.f32 %v252, %v253
  %v255 = vstv %s72
  %vm256 = vcmp.lt.s32.totalorder %v255, %v22
  %v257 = vsel %vm256, 1, 0
  %258 = vset.pattern.permute.xlu0 0
  %259 = vperm.xlu0 %258, %v257
  %v260 = vpop.permute.xlu0 %259
  %vm261 = vcmp.eq.s32.totalorder %v260, 1
  %v262 = vsel %vm261, %v254, %v73
  %s263 = scalar_lea.vmem %s1, 24
  %v264 = vld [vmem:[%s263] sm:$0xff]
  %v265 = vld [vmem:[%s263 + $0x8] sm:$0xff]
  %v266 = vld [vmem:[%s263 + $0x10] sm:$0xff]
  %267 = vmatprep.subr.mxu0 %v69
  %268 = vmatpush1.msra.mxu0 %v68
  %269 = vmatprep.subr.mxu0 %v66
  %270 = vmatpush1.msra.mxu0 %v65
  %271 = vmatprep.subr.mxu0 %v63
  %272 = vmatpush1.msra.mxu0 %v62
  %273 = vmatprep.subr.mxu0 %v60
  %274 = vmatpush1.msra.mxu0 %v59
  %275 = vmatprep.subr.mxu0 %v57
  %276 = vmatpush1.msra.mxu0 %v56
  %277 = vmatprep.subr.mxu0 %v54
  %278 = vmatpush1.msra.mxu0 %v53
  %279 = vmatprep.subr.mxu0 %v51
  %280 = vmatpush1.msra.mxu0 %v50
  %281 = vmatprep.subr.mxu0 %v48
  %282 = vmatpush1.msra.mxu0 %v47
  %283 = vmatprep.subr.mxu0 %v45
  %284 = vmatpush1.msra.mxu0 %v44
  %285 = vmatprep.subr.mxu0 %v42
  %286 = vmatpush1.msra.mxu0 %v41
  %287 = vmatprep.subr.mxu0 %v39
  %288 = vmatpush1.msra.mxu0 %v38
  %289 = vmatprep.subr.mxu0 %v36
  %290 = vmatpush1.msra.mxu0 %v35
  %291 = vmatprep.subr.mxu0 %v33
  %292 = vmatpush1.msra.mxu0 %v32
  %293 = vmatprep.subr.mxu0 %v30
  %294 = vmatpush1.msra.mxu0 %v29
  %295 = vmatprep.subr.mxu0 %v27
  %296 = vmatpush1.msra.mxu0 %v26
  %297 = vmatprep.subr.mxu0 %v24
  %298 = vmatpush1.msra.mxu0 %v23
  %299 = vmatprep.subr.mxu0 0.0
  %300 = vmatpush2.msra.mxu0 0.0
  %301 = vmatprep.subr.mxu0 0.0
  %302 = vmatpush2.msra.mxu0 0.0
  %303 = vmatprep.subr.mxu0 0.0
  %304 = vmatpush2.msra.mxu0 0.0
  %305 = vmatprep.subr.mxu0 0.0
  %306 = vmatpush2.msra.mxu0 0.0
  %307 = vmatprep.subr.mxu0 0.0
  %308 = vmatpush2.msra.mxu0 0.0
  %309 = vmatprep.subr.mxu0 0.0
  %310 = vmatpush2.msra.mxu0 0.0
  %311 = vmatprep.subr.mxu0 0.0
  %312 = vmatpush2.msra.mxu0 0.0
  %313 = vmatprep.subr.mxu0 0.0
  %314 = vmatpush2.msra.mxu0 0.0
  %315 = vmatprep.subr.mxu0 0.0
  %316 = vmatpush2.msra.mxu0 0.0
  %317 = vmatprep.subr.mxu0 0.0
  %318 = vmatpush2.msra.mxu0 0.0
  %319 = vmatprep.subr.mxu0 0.0
  %320 = vmatpush2.msra.mxu0 0.0
  %321 = vmatprep.subr.mxu0 0.0
  %322 = vmatpush2.msra.mxu0 0.0
  %323 = vmatprep.subr.mxu0 0.0
  %324 = vmatpush2.msra.mxu0 0.0
  %325 = vmatprep.subr.mxu0 0.0
  %326 = vmatpush2.msra.mxu0 0.0
  %327 = vmatprep.subr.mxu0 0.0
  %328 = vmatpush2.msra.mxu0 0.0
  %329 = vmatprep.subr.mxu0 0.0
  %330 = vmatpush2.msra.mxu0 0.0
  %331 = vmatprep.mubr.f32.mxu0 0.0
  %332 = vmatmul.mubr.f32.gmra.mxu0 %v262
  %v333 = vpop.f32.mrf.mxu0
  %v334 = vadd.f32 %v81, %v333
  %v335 = vpop.f32.mrf.mxu0
  %v336 = vadd.f32 %v85, %v335
  %337 = vdwg.mxu0
  %338 = vmatprep.subr.mxu0 0.0
  %339 = vmatpush1.msra.mxu0 %v70
  %340 = vmatprep.subr.mxu0 0.0
  %341 = vmatpush1.msra.mxu0 %v67
  %342 = vmatprep.subr.mxu0 0.0
  %343 = vmatpush1.msra.mxu0 %v64
  %344 = vmatprep.subr.mxu0 0.0
  %345 = vmatpush1.msra.mxu0 %v61
  %346 = vmatprep.subr.mxu0 0.0
  %347 = vmatpush1.msra.mxu0 %v58
  %348 = vmatprep.subr.mxu0 0.0
  %349 = vmatpush1.msra.mxu0 %v55
  %350 = vmatprep.subr.mxu0 0.0
  %351 = vmatpush1.msra.mxu0 %v52
  %352 = vmatprep.subr.mxu0 0.0
  %353 = vmatpush1.msra.mxu0 %v49
  %354 = vmatprep.subr.mxu0 0.0
  %355 = vmatpush1.msra.mxu0 %v46
  %356 = vmatprep.subr.mxu0 0.0
  %357 = vmatpush1.msra.mxu0 %v43
  %358 = vmatprep.subr.mxu0 0.0
  %359 = vmatpush1.msra.mxu0 %v40
  %360 = vmatprep.subr.mxu0 0.0
  %361 = vmatpush1.msra.mxu0 %v37
  %362 = vmatprep.subr.mxu0 0.0
  %363 = vmatpush1.msra.mxu0 %v34
  %364 = vmatprep.subr.mxu0 0.0
  %365 = vmatpush1.msra.mxu0 %v31
  %366 = vmatprep.subr.mxu0 0.0
  %367 = vmatpush1.msra.mxu0 %v28
  %368 = vmatprep.subr.mxu0 0.0
  %369 = vmatpush1.msra.mxu0 %v25
  %370 = vmatprep.subr.mxu0 0.0
  %371 = vmatpush2.msra.mxu0 0.0
  %372 = vmatprep.subr.mxu0 0.0
  %373 = vmatpush2.msra.mxu0 0.0
  %374 = vmatprep.subr.mxu0 0.0
  %375 = vmatpush2.msra.mxu0 0.0
  %376 = vmatprep.subr.mxu0 0.0
  %377 = vmatpush2.msra.mxu0 0.0
  %378 = vmatprep.subr.mxu0 0.0
  %379 = vmatpush2.msra.mxu0 0.0
  %380 = vmatprep.subr.mxu0 0.0
  %381 = vmatpush2.msra.mxu0 0.0
  %382 = vmatprep.subr.mxu0 0.0
  %383 = vmatpush2.msra.mxu0 0.0
  %384 = vmatprep.subr.mxu0 0.0
  %385 = vmatpush2.msra.mxu0 0.0
  %386 = vmatprep.subr.mxu0 0.0
  %387 = vmatpush2.msra.mxu0 0.0
  %388 = vmatprep.subr.mxu0 0.0
  %389 = vmatpush2.msra.mxu0 0.0
  %390 = vmatprep.subr.mxu0 0.0
  %391 = vmatpush2.msra.mxu0 0.0
  %392 = vmatprep.subr.mxu0 0.0
  %393 = vmatpush2.msra.mxu0 0.0
  %394 = vmatprep.subr.mxu0 0.0
  %395 = vmatpush2.msra.mxu0 0.0
  %396 = vmatprep.subr.mxu0 0.0
  %397 = vmatpush2.msra.mxu0 0.0
  %398 = vmatprep.subr.mxu0 0.0
  %399 = vmatpush2.msra.mxu0 0.0
  %400 = vmatprep.subr.mxu0 0.0
  %401 = vmatpush2.msra.mxu0 0.0
  %402 = vmatprep.mubr.f32.mxu0 0.0
  %403 = vmatmul.mubr.f32.gmra.mxu0 %v262
  %v404 = vpop.f32.mrf.mxu0
  %v405 = vadd.f32 %v89, %v404
  %v406 = vpop.f32.mrf.mxu0
  %407 = vdwg.mxu0
  %v408 = vadd.f32 %v264, %v334
  %v409 = vxor.u32 %v408, 2147483648
  %v410 = vmul.f32 %v409, 1.442695
  %v411 = vpow.pop %v410
  %v412 = vadd.f32 %v411, 1.0
  %v413 = vrcp.pop %v412
  %v414 = vmul.f32 1.0, %v413
  %v415 = vadd.f32 %v265, %v336
  %v416 = vxor.u32 %v415, 2147483648
  %v417 = vmul.f32 %v416, 1.442695
  %v418 = vpow.pop %v417
  %v419 = vadd.f32 %v418, 1.0
  %v420 = vrcp.pop %v419
  %v421 = vmul.f32 1.0, %v420
  %v422 = vmul.f32 %v414, %v405
  %v423 = vadd.f32 %v266, %v422
  %v424 = vtanh.pop %v423
  %v425 = vsub.f32 1.0, %v421
  %v426 = vmul.f32 %v425, %v424
  %v427 = vmul.f32 %v421, %v262
  %v428 = vadd.f32 %v426, %v427
  %s429 = sadd.s32 %s72, 1
  %v430 = vstv %s429
  %vm431 = vcmp.lt.s32.totalorder %v430, %v22
  %v432 = vsel %vm431, 1, 0
  %433 = vset.pattern.permute.xlu0 0
  %434 = vperm.xlu0 %433, %v432
  %v435 = vpop.permute.xlu0 %434
  %vm436 = vcmp.eq.s32.totalorder %v435, 1
  %v437 = vsel %vm436, %v428, %v262
  %s438 = scalar_lea.vmem %s1, 48
  %v439 = vld [vmem:[%s438] sm:$0xff]
  %v440 = vld [vmem:[%s438 + $0x8] sm:$0xff]
  %v441 = vld [vmem:[%s438 + $0x10] sm:$0xff]
  %442 = vmatprep.subr.mxu0 %v69
  %443 = vmatpush1.msra.mxu0 %v68
  %444 = vmatprep.subr.mxu0 %v66
  %445 = vmatpush1.msra.mxu0 %v65
  %446 = vmatprep.subr.mxu0 %v63
  %447 = vmatpush1.msra.mxu0 %v62
  %448 = vmatprep.subr.mxu0 %v60
  %449 = vmatpush1.msra.mxu0 %v59
  %450 = vmatprep.subr.mxu0 %v57
  %451 = vmatpush1.msra.mxu0 %v56
  %452 = vmatprep.subr.mxu0 %v54
  %453 = vmatpush1.msra.mxu0 %v53
  %454 = vmatprep.subr.mxu0 %v51
  %455 = vmatpush1.msra.mxu0 %v50
  %456 = vmatprep.subr.mxu0 %v48
  %457 = vmatpush1.msra.mxu0 %v47
  %458 = vmatprep.subr.mxu0 %v45
  %459 = vmatpush1.msra.mxu0 %v44
  %460 = vmatprep.subr.mxu0 %v42
  %461 = vmatpush1.msra.mxu0 %v41
  %462 = vmatprep.subr.mxu0 %v39
  %463 = vmatpush1.msra.mxu0 %v38
  %464 = vmatprep.subr.mxu0 %v36
  %465 = vmatpush1.msra.mxu0 %v35
  %466 = vmatprep.subr.mxu0 %v33
  %467 = vmatpush1.msra.mxu0 %v32
  %468 = vmatprep.subr.mxu0 %v30
  %469 = vmatpush1.msra.mxu0 %v29
  %470 = vmatprep.subr.mxu0 %v27
  %471 = vmatpush1.msra.mxu0 %v26
  %472 = vmatprep.subr.mxu0 %v24
  %473 = vmatpush1.msra.mxu0 %v23
  %474 = vmatprep.subr.mxu0 0.0
  %475 = vmatpush2.msra.mxu0 0.0
  %476 = vmatprep.subr.mxu0 0.0
  %477 = vmatpush2.msra.mxu0 0.0
  %478 = vmatprep.subr.mxu0 0.0
  %479 = vmatpush2.msra.mxu0 0.0
  %480 = vmatprep.subr.mxu0 0.0
  %481 = vmatpush2.msra.mxu0 0.0
  %482 = vmatprep.subr.mxu0 0.0
  %483 = vmatpush2.msra.mxu0 0.0
  %484 = vmatprep.subr.mxu0 0.0
  %485 = vmatpush2.msra.mxu0 0.0
  %486 = vmatprep.subr.mxu0 0.0
  %487 = vmatpush2.msra.mxu0 0.0
  %488 = vmatprep.subr.mxu0 0.0
  %489 = vmatpush2.msra.mxu0 0.0
  %490 = vmatprep.subr.mxu0 0.0
  %491 = vmatpush2.msra.mxu0 0.0
  %492 = vmatprep.subr.mxu0 0.0
  %493 = vmatpush2.msra.mxu0 0.0
  %494 = vmatprep.subr.mxu0 0.0
  %495 = vmatpush2.msra.mxu0 0.0
  %496 = vmatprep.subr.mxu0 0.0
  %497 = vmatpush2.msra.mxu0 0.0
  %498 = vmatprep.subr.mxu0 0.0
  %499 = vmatpush2.msra.mxu0 0.0
  %500 = vmatprep.subr.mxu0 0.0
  %501 = vmatpush2.msra.mxu0 0.0
  %502 = vmatprep.subr.mxu0 0.0
  %503 = vmatpush2.msra.mxu0 0.0
  %504 = vmatprep.subr.mxu0 0.0
  %505 = vmatpush2.msra.mxu0 0.0
  %506 = vmatprep.mubr.f32.mxu0 0.0
  %507 = vmatmul.mubr.f32.gmra.mxu0 %v437
  %v508 = vpop.f32.mrf.mxu0
  %v509 = vadd.f32 %v81, %v508
  %v510 = vpop.f32.mrf.mxu0
  %v511 = vadd.f32 %v85, %v510
  %512 = vdwg.mxu0
  %513 = vmatprep.subr.mxu0 0.0
  %514 = vmatpush1.msra.mxu0 %v70
  %515 = vmatprep.subr.mxu0 0.0
  %516 = vmatpush1.msra.mxu0 %v67
  %517 = vmatprep.subr.mxu0 0.0
  %518 = vmatpush1.msra.mxu0 %v64
  %519 = vmatprep.subr.mxu0 0.0
  %520 = vmatpush1.msra.mxu0 %v61
  %521 = vmatprep.subr.mxu0 0.0
  %522 = vmatpush1.msra.mxu0 %v58
  %523 = vmatprep.subr.mxu0 0.0
  %524 = vmatpush1.msra.mxu0 %v55
  %525 = vmatprep.subr.mxu0 0.0
  %526 = vmatpush1.msra.mxu0 %v52
  %527 = vmatprep.subr.mxu0 0.0
  %528 = vmatpush1.msra.mxu0 %v49
  %529 = vmatprep.subr.mxu0 0.0
  %530 = vmatpush1.msra.mxu0 %v46
  %531 = vmatprep.subr.mxu0 0.0
  %532 = vmatpush1.msra.mxu0 %v43
  %533 = vmatprep.subr.mxu0 0.0
  %534 = vmatpush1.msra.mxu0 %v40
  %535 = vmatprep.subr.mxu0 0.0
  %536 = vmatpush1.msra.mxu0 %v37
  %537 = vmatprep.subr.mxu0 0.0
  %538 = vmatpush1.msra.mxu0 %v34
  %539 = vmatprep.subr.mxu0 0.0
  %540 = vmatpush1.msra.mxu0 %v31
  %541 = vmatprep.subr.mxu0 0.0
  %542 = vmatpush1.msra.mxu0 %v28
  %543 = vmatprep.subr.mxu0 0.0
  %544 = vmatpush1.msra.mxu0 %v25
  %545 = vmatprep.subr.mxu0 0.0
  %546 = vmatpush2.msra.mxu0 0.0
  %547 = vmatprep.subr.mxu0 0.0
  %548 = vmatpush2.msra.mxu0 0.0
  %549 = vmatprep.subr.mxu0 0.0
  %550 = vmatpush2.msra.mxu0 0.0
  %551 = vmatprep.subr.mxu0 0.0
  %552 = vmatpush2.msra.mxu0 0.0
  %553 = vmatprep.subr.mxu0 0.0
  %554 = vmatpush2.msra.mxu0 0.0
  %555 = vmatprep.subr.mxu0 0.0
  %556 = vmatpush2.msra.mxu0 0.0
  %557 = vmatprep.subr.mxu0 0.0
  %558 = vmatpush2.msra.mxu0 0.0
  %559 = vmatprep.subr.mxu0 0.0
  %560 = vmatpush2.msra.mxu0 0.0
  %561 = vmatprep.subr.mxu0 0.0
  %562 = vmatpush2.msra.mxu0 0.0
  %563 = vmatprep.subr.mxu0 0.0
  %564 = vmatpush2.msra.mxu0 0.0
  %565 = vmatprep.subr.mxu0 0.0
  %566 = vmatpush2.msra.mxu0 0.0
  %567 = vmatprep.subr.mxu0 0.0
  %568 = vmatpush2.msra.mxu0 0.0
  %569 = vmatprep.subr.mxu0 0.0
  %570 = vmatpush2.msra.mxu0 0.0
  %571 = vmatprep.subr.mxu0 0.0
  %572 = vmatpush2.msra.mxu0 0.0
  %573 = vmatprep.subr.mxu0 0.0
  %574 = vmatpush2.msra.mxu0 0.0
  %575 = vmatprep.subr.mxu0 0.0
  %576 = vmatpush2.msra.mxu0 0.0
  %577 = vmatprep.mubr.f32.mxu0 0.0
  %578 = vmatmul.mubr.f32.gmra.mxu0 %v437
  %v579 = vpop.f32.mrf.mxu0
  %v580 = vadd.f32 %v89, %v579
  %v581 = vpop.f32.mrf.mxu0
  %582 = vdwg.mxu0
  %v583 = vadd.f32 %v439, %v509
  %v584 = vxor.u32 %v583, 2147483648
  %v585 = vmul.f32 %v584, 1.442695
  %v586 = vpow.pop %v585
  %v587 = vadd.f32 %v586, 1.0
  %v588 = vrcp.pop %v587
  %v589 = vmul.f32 1.0, %v588
  %v590 = vadd.f32 %v440, %v511
  %v591 = vxor.u32 %v590, 2147483648
  %v592 = vmul.f32 %v591, 1.442695
  %v593 = vpow.pop %v592
  %v594 = vadd.f32 %v593, 1.0
  %v595 = vrcp.pop %v594
  %v596 = vmul.f32 1.0, %v595
  %v597 = vmul.f32 %v589, %v580
  %v598 = vadd.f32 %v441, %v597
  %v599 = vtanh.pop %v598
  %v600 = vsub.f32 1.0, %v596
  %v601 = vmul.f32 %v600, %v599
  %v602 = vmul.f32 %v596, %v437
  %v603 = vadd.f32 %v601, %v602
  %s604 = sadd.s32 %s72, 2
  %v605 = vstv %s604
  %vm606 = vcmp.lt.s32.totalorder %v605, %v22
  %v607 = vsel %vm606, 1, 0
  %608 = vset.pattern.permute.xlu0 0
  %609 = vperm.xlu0 %608, %v607
  %v610 = vpop.permute.xlu0 %609
  %vm611 = vcmp.eq.s32.totalorder %v610, 1
  %v612 = vsel %vm611, %v603, %v437
  %s613 = scalar_lea.vmem %s1, 72
  %v614 = vld [vmem:[%s613] sm:$0xff]
  %v615 = vld [vmem:[%s613 + $0x8] sm:$0xff]
  %v616 = vld [vmem:[%s613 + $0x10] sm:$0xff]
  %617 = vmatprep.subr.mxu0 %v69
  %618 = vmatpush1.msra.mxu0 %v68
  %619 = vmatprep.subr.mxu0 %v66
  %620 = vmatpush1.msra.mxu0 %v65
  %621 = vmatprep.subr.mxu0 %v63
  %622 = vmatpush1.msra.mxu0 %v62
  %623 = vmatprep.subr.mxu0 %v60
  %624 = vmatpush1.msra.mxu0 %v59
  %625 = vmatprep.subr.mxu0 %v57
  %626 = vmatpush1.msra.mxu0 %v56
  %627 = vmatprep.subr.mxu0 %v54
  %628 = vmatpush1.msra.mxu0 %v53
  %629 = vmatprep.subr.mxu0 %v51
  %630 = vmatpush1.msra.mxu0 %v50
  %631 = vmatprep.subr.mxu0 %v48
  %632 = vmatpush1.msra.mxu0 %v47
  %633 = vmatprep.subr.mxu0 %v45
  %634 = vmatpush1.msra.mxu0 %v44
  %635 = vmatprep.subr.mxu0 %v42
  %636 = vmatpush1.msra.mxu0 %v41
  %637 = vmatprep.subr.mxu0 %v39
  %638 = vmatpush1.msra.mxu0 %v38
  %639 = vmatprep.subr.mxu0 %v36
  %640 = vmatpush1.msra.mxu0 %v35
  %641 = vmatprep.subr.mxu0 %v33
  %642 = vmatpush1.msra.mxu0 %v32
  %643 = vmatprep.subr.mxu0 %v30
  %644 = vmatpush1.msra.mxu0 %v29
  %645 = vmatprep.subr.mxu0 %v27
  %646 = vmatpush1.msra.mxu0 %v26
  %647 = vmatprep.subr.mxu0 %v24
  %648 = vmatpush1.msra.mxu0 %v23
  %649 = vmatprep.subr.mxu0 0.0
  %650 = vmatpush2.msra.mxu0 0.0
  %651 = vmatprep.subr.mxu0 0.0
  %652 = vmatpush2.msra.mxu0 0.0
  %653 = vmatprep.subr.mxu0 0.0
  %654 = vmatpush2.msra.mxu0 0.0
  %655 = vmatprep.subr.mxu0 0.0
  %656 = vmatpush2.msra.mxu0 0.0
  %657 = vmatprep.subr.mxu0 0.0
  %658 = vmatpush2.msra.mxu0 0.0
  %659 = vmatprep.subr.mxu0 0.0
  %660 = vmatpush2.msra.mxu0 0.0
  %661 = vmatprep.subr.mxu0 0.0
  %662 = vmatpush2.msra.mxu0 0.0
  %663 = vmatprep.subr.mxu0 0.0
  %664 = vmatpush2.msra.mxu0 0.0
  %665 = vmatprep.subr.mxu0 0.0
  %666 = vmatpush2.msra.mxu0 0.0
  %667 = vmatprep.subr.mxu0 0.0
  %668 = vmatpush2.msra.mxu0 0.0
  %669 = vmatprep.subr.mxu0 0.0
  %670 = vmatpush2.msra.mxu0 0.0
  %671 = vmatprep.subr.mxu0 0.0
  %672 = vmatpush2.msra.mxu0 0.0
  %673 = vmatprep.subr.mxu0 0.0
  %674 = vmatpush2.msra.mxu0 0.0
  %675 = vmatprep.subr.mxu0 0.0
  %676 = vmatpush2.msra.mxu0 0.0
  %677 = vmatprep.subr.mxu0 0.0
  %678 = vmatpush2.msra.mxu0 0.0
  %679 = vmatprep.subr.mxu0 0.0
  %680 = vmatpush2.msra.mxu0 0.0
  %681 = vmatprep.mubr.f32.mxu0 0.0
  %682 = vmatmul.mubr.f32.gmra.mxu0 %v612
  %v683 = vpop.f32.mrf.mxu0
  %v684 = vadd.f32 %v81, %v683
  %v685 = vpop.f32.mrf.mxu0
  %v686 = vadd.f32 %v85, %v685
  %687 = vdwg.mxu0
  %688 = vmatprep.subr.mxu0 0.0
  %689 = vmatpush1.msra.mxu0 %v70
  %690 = vmatprep.subr.mxu0 0.0
  %691 = vmatpush1.msra.mxu0 %v67
  %692 = vmatprep.subr.mxu0 0.0
  %693 = vmatpush1.msra.mxu0 %v64
  %694 = vmatprep.subr.mxu0 0.0
  %695 = vmatpush1.msra.mxu0 %v61
  %696 = vmatprep.subr.mxu0 0.0
  %697 = vmatpush1.msra.mxu0 %v58
  %698 = vmatprep.subr.mxu0 0.0
  %699 = vmatpush1.msra.mxu0 %v55
  %700 = vmatprep.subr.mxu0 0.0
  %701 = vmatpush1.msra.mxu0 %v52
  %702 = vmatprep.subr.mxu0 0.0
  %703 = vmatpush1.msra.mxu0 %v49
  %704 = vmatprep.subr.mxu0 0.0
  %705 = vmatpush1.msra.mxu0 %v46
  %706 = vmatprep.subr.mxu0 0.0
  %707 = vmatpush1.msra.mxu0 %v43
  %708 = vmatprep.subr.mxu0 0.0
  %709 = vmatpush1.msra.mxu0 %v40
  %710 = vmatprep.subr.mxu0 0.0
  %711 = vmatpush1.msra.mxu0 %v37
  %712 = vmatprep.subr.mxu0 0.0
  %713 = vmatpush1.msra.mxu0 %v34
  %714 = vmatprep.subr.mxu0 0.0
  %715 = vmatpush1.msra.mxu0 %v31
  %716 = vmatprep.subr.mxu0 0.0
  %717 = vmatpush1.msra.mxu0 %v28
  %718 = vmatprep.subr.mxu0 0.0
  %719 = vmatpush1.msra.mxu0 %v25
  %720 = vmatprep.subr.mxu0 0.0
  %721 = vmatpush2.msra.mxu0 0.0
  %722 = vmatprep.subr.mxu0 0.0
  %723 = vmatpush2.msra.mxu0 0.0
  %724 = vmatprep.subr.mxu0 0.0
  %725 = vmatpush2.msra.mxu0 0.0
  %726 = vmatprep.subr.mxu0 0.0
  %727 = vmatpush2.msra.mxu0 0.0
  %728 = vmatprep.subr.mxu0 0.0
  %729 = vmatpush2.msra.mxu0 0.0
  %730 = vmatprep.subr.mxu0 0.0
  %731 = vmatpush2.msra.mxu0 0.0
  %732 = vmatprep.subr.mxu0 0.0
  %733 = vmatpush2.msra.mxu0 0.0
  %734 = vmatprep.subr.mxu0 0.0
  %735 = vmatpush2.msra.mxu0 0.0
  %736 = vmatprep.subr.mxu0 0.0
  %737 = vmatpush2.msra.mxu0 0.0
  %738 = vmatprep.subr.mxu0 0.0
  %739 = vmatpush2.msra.mxu0 0.0
  %740 = vmatprep.subr.mxu0 0.0
  %741 = vmatpush2.msra.mxu0 0.0
  %742 = vmatprep.subr.mxu0 0.0
  %743 = vmatpush2.msra.mxu0 0.0
  %744 = vmatprep.subr.mxu0 0.0
  %745 = vmatpush2.msra.mxu0 0.0
  %746 = vmatprep.subr.mxu0 0.0
  %747 = vmatpush2.msra.mxu0 0.0
  %748 = vmatprep.subr.mxu0 0.0
  %749 = vmatpush2.msra.mxu0 0.0
  %750 = vmatprep.subr.mxu0 0.0
  %751 = vmatpush2.msra.mxu0 0.0
  %752 = vmatprep.mubr.f32.mxu0 0.0
  %753 = vmatmul.mubr.f32.gmra.mxu0 %v612
  %v754 = vpop.f32.mrf.mxu0
  %v755 = vadd.f32 %v89, %v754
  %v756 = vpop.f32.mrf.mxu0
  %757 = vdwg.mxu0
  %v758 = vadd.f32 %v614, %v684
  %v759 = vxor.u32 %v758, 2147483648
  %v760 = vmul.f32 %v759, 1.442695
  %v761 = vpow.pop %v760
  %v762 = vadd.f32 %v761, 1.0
  %v763 = vrcp.pop %v762
  %v764 = vmul.f32 1.0, %v763
  %v765 = vadd.f32 %v615, %v686
  %v766 = vxor.u32 %v765, 2147483648
  %v767 = vmul.f32 %v766, 1.442695
  %v768 = vpow.pop %v767
  %v769 = vadd.f32 %v768, 1.0
  %v770 = vrcp.pop %v769
  %v771 = vmul.f32 1.0, %v770
  %v772 = vmul.f32 %v764, %v755
  %v773 = vadd.f32 %v616, %v772
  %v774 = vtanh.pop %v773
  %v775 = vsub.f32 1.0, %v771
  %v776 = vmul.f32 %v775, %v774
  %v777 = vmul.f32 %v771, %v612
  %v778 = vadd.f32 %v776, %v777
  %s779 = sadd.s32 %s72, 3
  %v780 = vstv %s779
  %vm781 = vcmp.lt.s32.totalorder %v780, %v22
  %v782 = vsel %vm781, 1, 0
  %783 = vset.pattern.permute.xlu0 0
  %784 = vperm.xlu0 %783, %v782
  %v785 = vpop.permute.xlu0 %784
  %vm786 = vcmp.eq.s32.totalorder %v785, 1
  %v787 = vsel %vm786, %v778, %v612
  %s788 = scalar_lea.vmem %s1, 96
  %v789 = vld [vmem:[%s788] sm:$0xff]
  %v790 = vld [vmem:[%s788 + $0x8] sm:$0xff]
  %v791 = vld [vmem:[%s788 + $0x10] sm:$0xff]
  %792 = vmatprep.subr.mxu0 %v69
  %793 = vmatpush1.msra.mxu0 %v68
  %794 = vmatprep.subr.mxu0 %v66
  %795 = vmatpush1.msra.mxu0 %v65
  %796 = vmatprep.subr.mxu0 %v63
  %797 = vmatpush1.msra.mxu0 %v62
  %798 = vmatprep.subr.mxu0 %v60
  %799 = vmatpush1.msra.mxu0 %v59
  %800 = vmatprep.subr.mxu0 %v57
  %801 = vmatpush1.msra.mxu0 %v56
  %802 = vmatprep.subr.mxu0 %v54
  %803 = vmatpush1.msra.mxu0 %v53
  %804 = vmatprep.subr.mxu0 %v51
  %805 = vmatpush1.msra.mxu0 %v50
  %806 = vmatprep.subr.mxu0 %v48
  %807 = vmatpush1.msra.mxu0 %v47
  %808 = vmatprep.subr.mxu0 %v45
  %809 = vmatpush1.msra.mxu0 %v44
  %810 = vmatprep.subr.mxu0 %v42
  %811 = vmatpush1.msra.mxu0 %v41
  %812 = vmatprep.subr.mxu0 %v39
  %813 = vmatpush1.msra.mxu0 %v38
  %814 = vmatprep.subr.mxu0 %v36
  %815 = vmatpush1.msra.mxu0 %v35
  %816 = vmatprep.subr.mxu0 %v33
  %817 = vmatpush1.msra.mxu0 %v32
  %818 = vmatprep.subr.mxu0 %v30
  %819 = vmatpush1.msra.mxu0 %v29
  %820 = vmatprep.subr.mxu0 %v27
  %821 = vmatpush1.msra.mxu0 %v26
  %822 = vmatprep.subr.mxu0 %v24
  %823 = vmatpush1.msra.mxu0 %v23
  %824 = vmatprep.subr.mxu0 0.0
  %825 = vmatpush2.msra.mxu0 0.0
  %826 = vmatprep.subr.mxu0 0.0
  %827 = vmatpush2.msra.mxu0 0.0
  %828 = vmatprep.subr.mxu0 0.0
  %829 = vmatpush2.msra.mxu0 0.0
  %830 = vmatprep.subr.mxu0 0.0
  %831 = vmatpush2.msra.mxu0 0.0
  %832 = vmatprep.subr.mxu0 0.0
  %833 = vmatpush2.msra.mxu0 0.0
  %834 = vmatprep.subr.mxu0 0.0
  %835 = vmatpush2.msra.mxu0 0.0
  %836 = vmatprep.subr.mxu0 0.0
  %837 = vmatpush2.msra.mxu0 0.0
  %838 = vmatprep.subr.mxu0 0.0
  %839 = vmatpush2.msra.mxu0 0.0
  %840 = vmatprep.subr.mxu0 0.0
  %841 = vmatpush2.msra.mxu0 0.0
  %842 = vmatprep.subr.mxu0 0.0
  %843 = vmatpush2.msra.mxu0 0.0
  %844 = vmatprep.subr.mxu0 0.0
  %845 = vmatpush2.msra.mxu0 0.0
  %846 = vmatprep.subr.mxu0 0.0
  %847 = vmatpush2.msra.mxu0 0.0
  %848 = vmatprep.subr.mxu0 0.0
  %849 = vmatpush2.msra.mxu0 0.0
  %850 = vmatprep.subr.mxu0 0.0
  %851 = vmatpush2.msra.mxu0 0.0
  %852 = vmatprep.subr.mxu0 0.0
  %853 = vmatpush2.msra.mxu0 0.0
  %854 = vmatprep.subr.mxu0 0.0
  %855 = vmatpush2.msra.mxu0 0.0
  %856 = vmatprep.mubr.f32.mxu0 0.0
  %857 = vmatmul.mubr.f32.gmra.mxu0 %v787
  %v858 = vpop.f32.mrf.mxu0
  %v859 = vadd.f32 %v81, %v858
  %v860 = vpop.f32.mrf.mxu0
  %v861 = vadd.f32 %v85, %v860
  %862 = vdwg.mxu0
  %863 = vmatprep.subr.mxu0 0.0
  %864 = vmatpush1.msra.mxu0 %v70
  %865 = vmatprep.subr.mxu0 0.0
  %866 = vmatpush1.msra.mxu0 %v67
  %867 = vmatprep.subr.mxu0 0.0
  %868 = vmatpush1.msra.mxu0 %v64
  %869 = vmatprep.subr.mxu0 0.0
  %870 = vmatpush1.msra.mxu0 %v61
  %871 = vmatprep.subr.mxu0 0.0
  %872 = vmatpush1.msra.mxu0 %v58
  %873 = vmatprep.subr.mxu0 0.0
  %874 = vmatpush1.msra.mxu0 %v55
  %875 = vmatprep.subr.mxu0 0.0
  %876 = vmatpush1.msra.mxu0 %v52
  %877 = vmatprep.subr.mxu0 0.0
  %878 = vmatpush1.msra.mxu0 %v49
  %879 = vmatprep.subr.mxu0 0.0
  %880 = vmatpush1.msra.mxu0 %v46
  %881 = vmatprep.subr.mxu0 0.0
  %882 = vmatpush1.msra.mxu0 %v43
  %883 = vmatprep.subr.mxu0 0.0
  %884 = vmatpush1.msra.mxu0 %v40
  %885 = vmatprep.subr.mxu0 0.0
  %886 = vmatpush1.msra.mxu0 %v37
  %887 = vmatprep.subr.mxu0 0.0
  %888 = vmatpush1.msra.mxu0 %v34
  %889 = vmatprep.subr.mxu0 0.0
  %890 = vmatpush1.msra.mxu0 %v31
  %891 = vmatprep.subr.mxu0 0.0
  %892 = vmatpush1.msra.mxu0 %v28
  %893 = vmatprep.subr.mxu0 0.0
  %894 = vmatpush1.msra.mxu0 %v25
  %895 = vmatprep.subr.mxu0 0.0
  %896 = vmatpush2.msra.mxu0 0.0
  %897 = vmatprep.subr.mxu0 0.0
  %898 = vmatpush2.msra.mxu0 0.0
  %899 = vmatprep.subr.mxu0 0.0
  %900 = vmatpush2.msra.mxu0 0.0
  %901 = vmatprep.subr.mxu0 0.0
  %902 = vmatpush2.msra.mxu0 0.0
  %903 = vmatprep.subr.mxu0 0.0
  %904 = vmatpush2.msra.mxu0 0.0
  %905 = vmatprep.subr.mxu0 0.0
  %906 = vmatpush2.msra.mxu0 0.0
  %907 = vmatprep.subr.mxu0 0.0
  %908 = vmatpush2.msra.mxu0 0.0
  %909 = vmatprep.subr.mxu0 0.0
  %910 = vmatpush2.msra.mxu0 0.0
  %911 = vmatprep.subr.mxu0 0.0
  %912 = vmatpush2.msra.mxu0 0.0
  %913 = vmatprep.subr.mxu0 0.0
  %914 = vmatpush2.msra.mxu0 0.0
  %915 = vmatprep.subr.mxu0 0.0
  %916 = vmatpush2.msra.mxu0 0.0
  %917 = vmatprep.subr.mxu0 0.0
  %918 = vmatpush2.msra.mxu0 0.0
  %919 = vmatprep.subr.mxu0 0.0
  %920 = vmatpush2.msra.mxu0 0.0
  %921 = vmatprep.subr.mxu0 0.0
  %922 = vmatpush2.msra.mxu0 0.0
  %923 = vmatprep.subr.mxu0 0.0
  %924 = vmatpush2.msra.mxu0 0.0
  %925 = vmatprep.subr.mxu0 0.0
  %926 = vmatpush2.msra.mxu0 0.0
  %927 = vmatprep.mubr.f32.mxu0 0.0
  %928 = vmatmul.mubr.f32.gmra.mxu0 %v787
  %v929 = vpop.f32.mrf.mxu0
  %v930 = vadd.f32 %v89, %v929
  %v931 = vpop.f32.mrf.mxu0
  %932 = vdwg.mxu0
  %v933 = vadd.f32 %v789, %v859
  %v934 = vxor.u32 %v933, 2147483648
  %v935 = vmul.f32 %v934, 1.442695
  %v936 = vpow.pop %v935
  %v937 = vadd.f32 %v936, 1.0
  %v938 = vrcp.pop %v937
  %v939 = vmul.f32 1.0, %v938
  %v940 = vadd.f32 %v790, %v861
  %v941 = vxor.u32 %v940, 2147483648
  %v942 = vmul.f32 %v941, 1.442695
  %v943 = vpow.pop %v942
  %v944 = vadd.f32 %v943, 1.0
  %v945 = vrcp.pop %v944
  %v946 = vmul.f32 1.0, %v945
  %v947 = vmul.f32 %v939, %v930
  %v948 = vadd.f32 %v791, %v947
  %v949 = vtanh.pop %v948
  %v950 = vsub.f32 1.0, %v946
  %v951 = vmul.f32 %v950, %v949
  %v952 = vmul.f32 %v946, %v787
  %v953 = vadd.f32 %v951, %v952
  %s954 = sadd.s32 %s72, 4
  %v955 = vstv %s954
  %vm956 = vcmp.lt.s32.totalorder %v955, %v22
  %v957 = vsel %vm956, 1, 0
  %958 = vset.pattern.permute.xlu0 0
  %959 = vperm.xlu0 %958, %v957
  %v960 = vpop.permute.xlu0 %959
  %vm961 = vcmp.eq.s32.totalorder %v960, 1
  %v962 = vsel %vm961, %v953, %v787
  %s963 = scalar_lea.vmem %s1, 120
  %v964 = vld [vmem:[%s963] sm:$0xff]
  %v965 = vld [vmem:[%s963 + $0x8] sm:$0xff]
  %v966 = vld [vmem:[%s963 + $0x10] sm:$0xff]
  %967 = vmatprep.subr.mxu0 %v69
  %968 = vmatpush1.msra.mxu0 %v68
  %969 = vmatprep.subr.mxu0 %v66
  %970 = vmatpush1.msra.mxu0 %v65
  %971 = vmatprep.subr.mxu0 %v63
  %972 = vmatpush1.msra.mxu0 %v62
  %973 = vmatprep.subr.mxu0 %v60
  %974 = vmatpush1.msra.mxu0 %v59
  %975 = vmatprep.subr.mxu0 %v57
  %976 = vmatpush1.msra.mxu0 %v56
  %977 = vmatprep.subr.mxu0 %v54
  %978 = vmatpush1.msra.mxu0 %v53
  %979 = vmatprep.subr.mxu0 %v51
  %980 = vmatpush1.msra.mxu0 %v50
  %981 = vmatprep.subr.mxu0 %v48
  %982 = vmatpush1.msra.mxu0 %v47
  %983 = vmatprep.subr.mxu0 %v45
  %984 = vmatpush1.msra.mxu0 %v44
  %985 = vmatprep.subr.mxu0 %v42
  %986 = vmatpush1.msra.mxu0 %v41
  %987 = vmatprep.subr.mxu0 %v39
  %988 = vmatpush1.msra.mxu0 %v38
  %989 = vmatprep.subr.mxu0 %v36
  %990 = vmatpush1.msra.mxu0 %v35
  %991 = vmatprep.subr.mxu0 %v33
  %992 = vmatpush1.msra.mxu0 %v32
  %993 = vmatprep.subr.mxu0 %v30
  %994 = vmatpush1.msra.mxu0 %v29
  %995 = vmatprep.subr.mxu0 %v27
  %996 = vmatpush1.msra.mxu0 %v26
  %997 = vmatprep.subr.mxu0 %v24
  %998 = vmatpush1.msra.mxu0 %v23
  %999 = vmatprep.subr.mxu0 0.0
  %1000 = vmatpush2.msra.mxu0 0.0
  %1001 = vmatprep.subr.mxu0 0.0
  %1002 = vmatpush2.msra.mxu0 0.0
  %1003 = vmatprep.subr.mxu0 0.0
  %1004 = vmatpush2.msra.mxu0 0.0
  %1005 = vmatprep.subr.mxu0 0.0
  %1006 = vmatpush2.msra.mxu0 0.0
  %1007 = vmatprep.subr.mxu0 0.0
  %1008 = vmatpush2.msra.mxu0 0.0
  %1009 = vmatprep.subr.mxu0 0.0
  %1010 = vmatpush2.msra.mxu0 0.0
  %1011 = vmatprep.subr.mxu0 0.0
  %1012 = vmatpush2.msra.mxu0 0.0
  %1013 = vmatprep.subr.mxu0 0.0
  %1014 = vmatpush2.msra.mxu0 0.0
  %1015 = vmatprep.subr.mxu0 0.0
  %1016 = vmatpush2.msra.mxu0 0.0
  %1017 = vmatprep.subr.mxu0 0.0
  %1018 = vmatpush2.msra.mxu0 0.0
  %1019 = vmatprep.subr.mxu0 0.0
  %1020 = vmatpush2.msra.mxu0 0.0
  %1021 = vmatprep.subr.mxu0 0.0
  %1022 = vmatpush2.msra.mxu0 0.0
  %1023 = vmatprep.subr.mxu0 0.0
  %1024 = vmatpush2.msra.mxu0 0.0
  %1025 = vmatprep.subr.mxu0 0.0
  %1026 = vmatpush2.msra.mxu0 0.0
  %1027 = vmatprep.subr.mxu0 0.0
  %1028 = vmatpush2.msra.mxu0 0.0
  %1029 = vmatprep.subr.mxu0 0.0
  %1030 = vmatpush2.msra.mxu0 0.0
  %1031 = vmatprep.mubr.f32.mxu0 0.0
  %1032 = vmatmul.mubr.f32.gmra.mxu0 %v962
  %v1033 = vpop.f32.mrf.mxu0
  %v1034 = vadd.f32 %v81, %v1033
  %v1035 = vpop.f32.mrf.mxu0
  %v1036 = vadd.f32 %v85, %v1035
  %1037 = vdwg.mxu0
  %1038 = vmatprep.subr.mxu0 0.0
  %1039 = vmatpush1.msra.mxu0 %v70
  %1040 = vmatprep.subr.mxu0 0.0
  %1041 = vmatpush1.msra.mxu0 %v67
  %1042 = vmatprep.subr.mxu0 0.0
  %1043 = vmatpush1.msra.mxu0 %v64
  %1044 = vmatprep.subr.mxu0 0.0
  %1045 = vmatpush1.msra.mxu0 %v61
  %1046 = vmatprep.subr.mxu0 0.0
  %1047 = vmatpush1.msra.mxu0 %v58
  %1048 = vmatprep.subr.mxu0 0.0
  %1049 = vmatpush1.msra.mxu0 %v55
  %1050 = vmatprep.subr.mxu0 0.0
  %1051 = vmatpush1.msra.mxu0 %v52
  %1052 = vmatprep.subr.mxu0 0.0
  %1053 = vmatpush1.msra.mxu0 %v49
  %1054 = vmatprep.subr.mxu0 0.0
  %1055 = vmatpush1.msra.mxu0 %v46
  %1056 = vmatprep.subr.mxu0 0.0
  %1057 = vmatpush1.msra.mxu0 %v43
  %1058 = vmatprep.subr.mxu0 0.0
  %1059 = vmatpush1.msra.mxu0 %v40
  %1060 = vmatprep.subr.mxu0 0.0
  %1061 = vmatpush1.msra.mxu0 %v37
  %1062 = vmatprep.subr.mxu0 0.0
  %1063 = vmatpush1.msra.mxu0 %v34
  %1064 = vmatprep.subr.mxu0 0.0
  %1065 = vmatpush1.msra.mxu0 %v31
  %1066 = vmatprep.subr.mxu0 0.0
  %1067 = vmatpush1.msra.mxu0 %v28
  %1068 = vmatprep.subr.mxu0 0.0
  %1069 = vmatpush1.msra.mxu0 %v25
  %1070 = vmatprep.subr.mxu0 0.0
  %1071 = vmatpush2.msra.mxu0 0.0
  %1072 = vmatprep.subr.mxu0 0.0
  %1073 = vmatpush2.msra.mxu0 0.0
  %1074 = vmatprep.subr.mxu0 0.0
  %1075 = vmatpush2.msra.mxu0 0.0
  %1076 = vmatprep.subr.mxu0 0.0
  %1077 = vmatpush2.msra.mxu0 0.0
  %1078 = vmatprep.subr.mxu0 0.0
  %1079 = vmatpush2.msra.mxu0 0.0
  %1080 = vmatprep.subr.mxu0 0.0
  %1081 = vmatpush2.msra.mxu0 0.0
  %1082 = vmatprep.subr.mxu0 0.0
  %1083 = vmatpush2.msra.mxu0 0.0
  %1084 = vmatprep.subr.mxu0 0.0
  %1085 = vmatpush2.msra.mxu0 0.0
  %1086 = vmatprep.subr.mxu0 0.0
  %1087 = vmatpush2.msra.mxu0 0.0
  %1088 = vmatprep.subr.mxu0 0.0
  %1089 = vmatpush2.msra.mxu0 0.0
  %1090 = vmatprep.subr.mxu0 0.0
  %1091 = vmatpush2.msra.mxu0 0.0
  %1092 = vmatprep.subr.mxu0 0.0
  %1093 = vmatpush2.msra.mxu0 0.0
  %1094 = vmatprep.subr.mxu0 0.0
  %1095 = vmatpush2.msra.mxu0 0.0
  %1096 = vmatprep.subr.mxu0 0.0
  %1097 = vmatpush2.msra.mxu0 0.0
  %1098 = vmatprep.subr.mxu0 0.0
  %1099 = vmatpush2.msra.mxu0 0.0
  %1100 = vmatprep.subr.mxu0 0.0
  %1101 = vmatpush2.msra.mxu0 0.0
  %1102 = vmatprep.mubr.f32.mxu0 0.0
  %1103 = vmatmul.mubr.f32.gmra.mxu0 %v962
  %v1104 = vpop.f32.mrf.mxu0
  %v1105 = vadd.f32 %v89, %v1104
  %v1106 = vpop.f32.mrf.mxu0
  %1107 = vdwg.mxu0
  %v1108 = vadd.f32 %v964, %v1034
  %v1109 = vxor.u32 %v1108, 2147483648
  %v1110 = vmul.f32 %v1109, 1.442695
  %v1111 = vpow.pop %v1110
  %v1112 = vadd.f32 %v1111, 1.0
  %v1113 = vrcp.pop %v1112
  %v1114 = vmul.f32 1.0, %v1113
  %v1115 = vadd.f32 %v965, %v1036
  %v1116 = vxor.u32 %v1115, 2147483648
  %v1117 = vmul.f32 %v1116, 1.442695
  %v1118 = vpow.pop %v1117
  %v1119 = vadd.f32 %v1118, 1.0
  %v1120 = vrcp.pop %v1119
  %v1121 = vmul.f32 1.0, %v1120
  %v1122 = vmul.f32 %v1114, %v1105
  %v1123 = vadd.f32 %v966, %v1122
  %v1124 = vtanh.pop %v1123
  %v1125 = vsub.f32 1.0, %v1121
  %v1126 = vmul.f32 %v1125, %v1124
  %v1127 = vmul.f32 %v1121, %v962
  %v1128 = vadd.f32 %v1126, %v1127
  %s1129 = sadd.s32 %s72, 5
  %v1130 = vstv %s1129
  %vm1131 = vcmp.lt.s32.totalorder %v1130, %v22
  %v1132 = vsel %vm1131, 1, 0
  %1133 = vset.pattern.permute.xlu0 0
  %1134 = vperm.xlu0 %1133, %v1132
  %v1135 = vpop.permute.xlu0 %1134
  %vm1136 = vcmp.eq.s32.totalorder %v1135, 1
  %v1137 = vsel %vm1136, %v1128, %v962
  %s1138 = scalar_lea.vmem %s1, 144
  %v1139 = vld [vmem:[%s1138] sm:$0xff]
  %v1140 = vld [vmem:[%s1138 + $0x8] sm:$0xff]
  %v1141 = vld [vmem:[%s1138 + $0x10] sm:$0xff]
  %1142 = vmatprep.subr.mxu0 %v69
  %1143 = vmatpush1.msra.mxu0 %v68
  %1144 = vmatprep.subr.mxu0 %v66
  %1145 = vmatpush1.msra.mxu0 %v65
  %1146 = vmatprep.subr.mxu0 %v63
  %1147 = vmatpush1.msra.mxu0 %v62
  %1148 = vmatprep.subr.mxu0 %v60
  %1149 = vmatpush1.msra.mxu0 %v59
  %1150 = vmatprep.subr.mxu0 %v57
  %1151 = vmatpush1.msra.mxu0 %v56
  %1152 = vmatprep.subr.mxu0 %v54
  %1153 = vmatpush1.msra.mxu0 %v53
  %1154 = vmatprep.subr.mxu0 %v51
  %1155 = vmatpush1.msra.mxu0 %v50
  %1156 = vmatprep.subr.mxu0 %v48
  %1157 = vmatpush1.msra.mxu0 %v47
  %1158 = vmatprep.subr.mxu0 %v45
  %1159 = vmatpush1.msra.mxu0 %v44
  %1160 = vmatprep.subr.mxu0 %v42
  %1161 = vmatpush1.msra.mxu0 %v41
  %1162 = vmatprep.subr.mxu0 %v39
  %1163 = vmatpush1.msra.mxu0 %v38
  %1164 = vmatprep.subr.mxu0 %v36
  %1165 = vmatpush1.msra.mxu0 %v35
  %1166 = vmatprep.subr.mxu0 %v33
  %1167 = vmatpush1.msra.mxu0 %v32
  %1168 = vmatprep.subr.mxu0 %v30
  %1169 = vmatpush1.msra.mxu0 %v29
  %1170 = vmatprep.subr.mxu0 %v27
  %1171 = vmatpush1.msra.mxu0 %v26
  %1172 = vmatprep.subr.mxu0 %v24
  %1173 = vmatpush1.msra.mxu0 %v23
  %1174 = vmatprep.subr.mxu0 0.0
  %1175 = vmatpush2.msra.mxu0 0.0
  %1176 = vmatprep.subr.mxu0 0.0
  %1177 = vmatpush2.msra.mxu0 0.0
  %1178 = vmatprep.subr.mxu0 0.0
  %1179 = vmatpush2.msra.mxu0 0.0
  %1180 = vmatprep.subr.mxu0 0.0
  %1181 = vmatpush2.msra.mxu0 0.0
  %1182 = vmatprep.subr.mxu0 0.0
  %1183 = vmatpush2.msra.mxu0 0.0
  %1184 = vmatprep.subr.mxu0 0.0
  %1185 = vmatpush2.msra.mxu0 0.0
  %1186 = vmatprep.subr.mxu0 0.0
  %1187 = vmatpush2.msra.mxu0 0.0
  %1188 = vmatprep.subr.mxu0 0.0
  %1189 = vmatpush2.msra.mxu0 0.0
  %1190 = vmatprep.subr.mxu0 0.0
  %1191 = vmatpush2.msra.mxu0 0.0
  %1192 = vmatprep.subr.mxu0 0.0
  %1193 = vmatpush2.msra.mxu0 0.0
  %1194 = vmatprep.subr.mxu0 0.0
  %1195 = vmatpush2.msra.mxu0 0.0
  %1196 = vmatprep.subr.mxu0 0.0
  %1197 = vmatpush2.msra.mxu0 0.0
  %1198 = vmatprep.subr.mxu0 0.0
  %1199 = vmatpush2.msra.mxu0 0.0
  %1200 = vmatprep.subr.mxu0 0.0
  %1201 = vmatpush2.msra.mxu0 0.0
  %1202 = vmatprep.subr.mxu0 0.0
  %1203 = vmatpush2.msra.mxu0 0.0
  %1204 = vmatprep.subr.mxu0 0.0
  %1205 = vmatpush2.msra.mxu0 0.0
  %1206 = vmatprep.mubr.f32.mxu0 0.0
  %1207 = vmatmul.mubr.f32.gmra.mxu0 %v1137
  %v1208 = vpop.f32.mrf.mxu0
  %v1209 = vadd.f32 %v81, %v1208
  %v1210 = vpop.f32.mrf.mxu0
  %v1211 = vadd.f32 %v85, %v1210
  %1212 = vdwg.mxu0
  %1213 = vmatprep.subr.mxu0 0.0
  %1214 = vmatpush1.msra.mxu0 %v70
  %1215 = vmatprep.subr.mxu0 0.0
  %1216 = vmatpush1.msra.mxu0 %v67
  %1217 = vmatprep.subr.mxu0 0.0
  %1218 = vmatpush1.msra.mxu0 %v64
  %1219 = vmatprep.subr.mxu0 0.0
  %1220 = vmatpush1.msra.mxu0 %v61
  %1221 = vmatprep.subr.mxu0 0.0
  %1222 = vmatpush1.msra.mxu0 %v58
  %1223 = vmatprep.subr.mxu0 0.0
  %1224 = vmatpush1.msra.mxu0 %v55
  %1225 = vmatprep.subr.mxu0 0.0
  %1226 = vmatpush1.msra.mxu0 %v52
  %1227 = vmatprep.subr.mxu0 0.0
  %1228 = vmatpush1.msra.mxu0 %v49
  %1229 = vmatprep.subr.mxu0 0.0
  %1230 = vmatpush1.msra.mxu0 %v46
  %1231 = vmatprep.subr.mxu0 0.0
  %1232 = vmatpush1.msra.mxu0 %v43
  %1233 = vmatprep.subr.mxu0 0.0
  %1234 = vmatpush1.msra.mxu0 %v40
  %1235 = vmatprep.subr.mxu0 0.0
  %1236 = vmatpush1.msra.mxu0 %v37
  %1237 = vmatprep.subr.mxu0 0.0
  %1238 = vmatpush1.msra.mxu0 %v34
  %1239 = vmatprep.subr.mxu0 0.0
  %1240 = vmatpush1.msra.mxu0 %v31
  %1241 = vmatprep.subr.mxu0 0.0
  %1242 = vmatpush1.msra.mxu0 %v28
  %1243 = vmatprep.subr.mxu0 0.0
  %1244 = vmatpush1.msra.mxu0 %v25
  %1245 = vmatprep.subr.mxu0 0.0
  %1246 = vmatpush2.msra.mxu0 0.0
  %1247 = vmatprep.subr.mxu0 0.0
  %1248 = vmatpush2.msra.mxu0 0.0
  %1249 = vmatprep.subr.mxu0 0.0
  %1250 = vmatpush2.msra.mxu0 0.0
  %1251 = vmatprep.subr.mxu0 0.0
  %1252 = vmatpush2.msra.mxu0 0.0
  %1253 = vmatprep.subr.mxu0 0.0
  %1254 = vmatpush2.msra.mxu0 0.0
  %1255 = vmatprep.subr.mxu0 0.0
  %1256 = vmatpush2.msra.mxu0 0.0
  %1257 = vmatprep.subr.mxu0 0.0
  %1258 = vmatpush2.msra.mxu0 0.0
  %1259 = vmatprep.subr.mxu0 0.0
  %1260 = vmatpush2.msra.mxu0 0.0
  %1261 = vmatprep.subr.mxu0 0.0
  %1262 = vmatpush2.msra.mxu0 0.0
  %1263 = vmatprep.subr.mxu0 0.0
  %1264 = vmatpush2.msra.mxu0 0.0
  %1265 = vmatprep.subr.mxu0 0.0
  %1266 = vmatpush2.msra.mxu0 0.0
  %1267 = vmatprep.subr.mxu0 0.0
  %1268 = vmatpush2.msra.mxu0 0.0
  %1269 = vmatprep.subr.mxu0 0.0
  %1270 = vmatpush2.msra.mxu0 0.0
  %1271 = vmatprep.subr.mxu0 0.0
  %1272 = vmatpush2.msra.mxu0 0.0
  %1273 = vmatprep.subr.mxu0 0.0
  %1274 = vmatpush2.msra.mxu0 0.0
  %1275 = vmatprep.subr.mxu0 0.0
  %1276 = vmatpush2.msra.mxu0 0.0
  %1277 = vmatprep.mubr.f32.mxu0 0.0
  %1278 = vmatmul.mubr.f32.gmra.mxu0 %v1137
  %v1279 = vpop.f32.mrf.mxu0
  %v1280 = vadd.f32 %v89, %v1279
  %v1281 = vpop.f32.mrf.mxu0
  %1282 = vdwg.mxu0
  %v1283 = vadd.f32 %v1139, %v1209
  %v1284 = vxor.u32 %v1283, 2147483648
  %v1285 = vmul.f32 %v1284, 1.442695
  %v1286 = vpow.pop %v1285
  %v1287 = vadd.f32 %v1286, 1.0
  %v1288 = vrcp.pop %v1287
  %v1289 = vmul.f32 1.0, %v1288
  %v1290 = vadd.f32 %v1140, %v1211
  %v1291 = vxor.u32 %v1290, 2147483648
  %v1292 = vmul.f32 %v1291, 1.442695
  %v1293 = vpow.pop %v1292
  %v1294 = vadd.f32 %v1293, 1.0
  %v1295 = vrcp.pop %v1294
  %v1296 = vmul.f32 1.0, %v1295
  %v1297 = vmul.f32 %v1289, %v1280
  %v1298 = vadd.f32 %v1141, %v1297
  %v1299 = vtanh.pop %v1298
  %v1300 = vsub.f32 1.0, %v1296
  %v1301 = vmul.f32 %v1300, %v1299
  %v1302 = vmul.f32 %v1296, %v1137
  %v1303 = vadd.f32 %v1301, %v1302
  %s1304 = sadd.s32 %s72, 6
  %v1305 = vstv %s1304
  %vm1306 = vcmp.lt.s32.totalorder %v1305, %v22
  %v1307 = vsel %vm1306, 1, 0
  %1308 = vset.pattern.permute.xlu0 0
  %1309 = vperm.xlu0 %1308, %v1307
  %v1310 = vpop.permute.xlu0 %1309
  %vm1311 = vcmp.eq.s32.totalorder %v1310, 1
  %v1312 = vsel %vm1311, %v1303, %v1137
  %s1313 = scalar_lea.vmem %s1, 168
  %v1314 = vld [vmem:[%s1313] sm:$0xff]
  %v1315 = vld [vmem:[%s1313 + $0x8] sm:$0xff]
  %v1316 = vld [vmem:[%s1313 + $0x10] sm:$0xff]
  %1317 = vmatprep.subr.mxu0 %v69
  %1318 = vmatpush1.msra.mxu0 %v68
  %1319 = vmatprep.subr.mxu0 %v66
  %1320 = vmatpush1.msra.mxu0 %v65
  %1321 = vmatprep.subr.mxu0 %v63
  %1322 = vmatpush1.msra.mxu0 %v62
  %1323 = vmatprep.subr.mxu0 %v60
  %1324 = vmatpush1.msra.mxu0 %v59
  %1325 = vmatprep.subr.mxu0 %v57
  %1326 = vmatpush1.msra.mxu0 %v56
  %1327 = vmatprep.subr.mxu0 %v54
  %1328 = vmatpush1.msra.mxu0 %v53
  %1329 = vmatprep.subr.mxu0 %v51
  %1330 = vmatpush1.msra.mxu0 %v50
  %1331 = vmatprep.subr.mxu0 %v48
  %1332 = vmatpush1.msra.mxu0 %v47
  %1333 = vmatprep.subr.mxu0 %v45
  %1334 = vmatpush1.msra.mxu0 %v44
  %1335 = vmatprep.subr.mxu0 %v42
  %1336 = vmatpush1.msra.mxu0 %v41
  %1337 = vmatprep.subr.mxu0 %v39
  %1338 = vmatpush1.msra.mxu0 %v38
  %1339 = vmatprep.subr.mxu0 %v36
  %1340 = vmatpush1.msra.mxu0 %v35
  %1341 = vmatprep.subr.mxu0 %v33
  %1342 = vmatpush1.msra.mxu0 %v32
  %1343 = vmatprep.subr.mxu0 %v30
  %1344 = vmatpush1.msra.mxu0 %v29
  %1345 = vmatprep.subr.mxu0 %v27
  %1346 = vmatpush1.msra.mxu0 %v26
  %1347 = vmatprep.subr.mxu0 %v24
  %1348 = vmatpush1.msra.mxu0 %v23
  %1349 = vmatprep.subr.mxu0 0.0
  %1350 = vmatpush2.msra.mxu0 0.0
  %1351 = vmatprep.subr.mxu0 0.0
  %1352 = vmatpush2.msra.mxu0 0.0
  %1353 = vmatprep.subr.mxu0 0.0
  %1354 = vmatpush2.msra.mxu0 0.0
  %1355 = vmatprep.subr.mxu0 0.0
  %1356 = vmatpush2.msra.mxu0 0.0
  %1357 = vmatprep.subr.mxu0 0.0
  %1358 = vmatpush2.msra.mxu0 0.0
  %1359 = vmatprep.subr.mxu0 0.0
  %1360 = vmatpush2.msra.mxu0 0.0
  %1361 = vmatprep.subr.mxu0 0.0
  %1362 = vmatpush2.msra.mxu0 0.0
  %1363 = vmatprep.subr.mxu0 0.0
  %1364 = vmatpush2.msra.mxu0 0.0
  %1365 = vmatprep.subr.mxu0 0.0
  %1366 = vmatpush2.msra.mxu0 0.0
  %1367 = vmatprep.subr.mxu0 0.0
  %1368 = vmatpush2.msra.mxu0 0.0
  %1369 = vmatprep.subr.mxu0 0.0
  %1370 = vmatpush2.msra.mxu0 0.0
  %1371 = vmatprep.subr.mxu0 0.0
  %1372 = vmatpush2.msra.mxu0 0.0
  %1373 = vmatprep.subr.mxu0 0.0
  %1374 = vmatpush2.msra.mxu0 0.0
  %1375 = vmatprep.subr.mxu0 0.0
  %1376 = vmatpush2.msra.mxu0 0.0
  %1377 = vmatprep.subr.mxu0 0.0
  %1378 = vmatpush2.msra.mxu0 0.0
  %1379 = vmatprep.subr.mxu0 0.0
  %1380 = vmatpush2.msra.mxu0 0.0
  %1381 = vmatprep.mubr.f32.mxu0 0.0
  %1382 = vmatmul.mubr.f32.gmra.mxu0 %v1312
  %v1383 = vpop.f32.mrf.mxu0
  %v1384 = vadd.f32 %v81, %v1383
  %v1385 = vpop.f32.mrf.mxu0
  %v1386 = vadd.f32 %v85, %v1385
  %1387 = vdwg.mxu0
  %1388 = vmatprep.subr.mxu0 0.0
  %1389 = vmatpush1.msra.mxu0 %v70
  %1390 = vmatprep.subr.mxu0 0.0
  %1391 = vmatpush1.msra.mxu0 %v67
  %1392 = vmatprep.subr.mxu0 0.0
  %1393 = vmatpush1.msra.mxu0 %v64
  %1394 = vmatprep.subr.mxu0 0.0
  %1395 = vmatpush1.msra.mxu0 %v61
  %1396 = vmatprep.subr.mxu0 0.0
  %1397 = vmatpush1.msra.mxu0 %v58
  %1398 = vmatprep.subr.mxu0 0.0
  %1399 = vmatpush1.msra.mxu0 %v55
  %1400 = vmatprep.subr.mxu0 0.0
  %1401 = vmatpush1.msra.mxu0 %v52
  %1402 = vmatprep.subr.mxu0 0.0
  %1403 = vmatpush1.msra.mxu0 %v49
  %1404 = vmatprep.subr.mxu0 0.0
  %1405 = vmatpush1.msra.mxu0 %v46
  %1406 = vmatprep.subr.mxu0 0.0
  %1407 = vmatpush1.msra.mxu0 %v43
  %1408 = vmatprep.subr.mxu0 0.0
  %1409 = vmatpush1.msra.mxu0 %v40
  %1410 = vmatprep.subr.mxu0 0.0
  %1411 = vmatpush1.msra.mxu0 %v37
  %1412 = vmatprep.subr.mxu0 0.0
  %1413 = vmatpush1.msra.mxu0 %v34
  %1414 = vmatprep.subr.mxu0 0.0
  %1415 = vmatpush1.msra.mxu0 %v31
  %1416 = vmatprep.subr.mxu0 0.0
  %1417 = vmatpush1.msra.mxu0 %v28
  %1418 = vmatprep.subr.mxu0 0.0
  %1419 = vmatpush1.msra.mxu0 %v25
  %1420 = vmatprep.subr.mxu0 0.0
  %1421 = vmatpush2.msra.mxu0 0.0
  %1422 = vmatprep.subr.mxu0 0.0
  %1423 = vmatpush2.msra.mxu0 0.0
  %1424 = vmatprep.subr.mxu0 0.0
  %1425 = vmatpush2.msra.mxu0 0.0
  %1426 = vmatprep.subr.mxu0 0.0
  %1427 = vmatpush2.msra.mxu0 0.0
  %1428 = vmatprep.subr.mxu0 0.0
  %1429 = vmatpush2.msra.mxu0 0.0
  %1430 = vmatprep.subr.mxu0 0.0
  %1431 = vmatpush2.msra.mxu0 0.0
  %1432 = vmatprep.subr.mxu0 0.0
  %1433 = vmatpush2.msra.mxu0 0.0
  %1434 = vmatprep.subr.mxu0 0.0
  %1435 = vmatpush2.msra.mxu0 0.0
  %1436 = vmatprep.subr.mxu0 0.0
  %1437 = vmatpush2.msra.mxu0 0.0
  %1438 = vmatprep.subr.mxu0 0.0
  %1439 = vmatpush2.msra.mxu0 0.0
  %1440 = vmatprep.subr.mxu0 0.0
  %1441 = vmatpush2.msra.mxu0 0.0
  %1442 = vmatprep.subr.mxu0 0.0
  %1443 = vmatpush2.msra.mxu0 0.0
  %1444 = vmatprep.subr.mxu0 0.0
  %1445 = vmatpush2.msra.mxu0 0.0
  %1446 = vmatprep.subr.mxu0 0.0
  %1447 = vmatpush2.msra.mxu0 0.0
  %1448 = vmatprep.subr.mxu0 0.0
  %1449 = vmatpush2.msra.mxu0 0.0
  %1450 = vmatprep.subr.mxu0 0.0
  %1451 = vmatpush2.msra.mxu0 0.0
  %1452 = vmatprep.mubr.f32.mxu0 0.0
  %1453 = vmatmul.mubr.f32.gmra.mxu0 %v1312
  %v1454 = vpop.f32.mrf.mxu0
  %v1455 = vadd.f32 %v89, %v1454
  %v1456 = vpop.f32.mrf.mxu0
  %1457 = vdwg.mxu0
  %v1458 = vadd.f32 %v1314, %v1384
  %v1459 = vxor.u32 %v1458, 2147483648
  %v1460 = vmul.f32 %v1459, 1.442695
  %v1461 = vpow.pop %v1460
  %v1462 = vadd.f32 %v1461, 1.0
  %v1463 = vrcp.pop %v1462
  %v1464 = vmul.f32 1.0, %v1463
  %v1465 = vadd.f32 %v1315, %v1386
  %v1466 = vxor.u32 %v1465, 2147483648
  %v1467 = vmul.f32 %v1466, 1.442695
  %v1468 = vpow.pop %v1467
  %v1469 = vadd.f32 %v1468, 1.0
  %v1470 = vrcp.pop %v1469
  %v1471 = vmul.f32 1.0, %v1470
  %v1472 = vmul.f32 %v1464, %v1455
  %v1473 = vadd.f32 %v1316, %v1472
  %v1474 = vtanh.pop %v1473
  %v1475 = vsub.f32 1.0, %v1471
  %v1476 = vmul.f32 %v1475, %v1474
  %v1477 = vmul.f32 %v1471, %v1312
  %v1478 = vadd.f32 %v1476, %v1477
  %s1479 = sadd.s32 %s72, 7
  %v1480 = vstv %s1479
  %vm1481 = vcmp.lt.s32.totalorder %v1480, %v22
  %v1482 = vsel %vm1481, 1, 0
  %1483 = vset.pattern.permute.xlu0 0
  %1484 = vperm.xlu0 %1483, %v1482
  %v1485 = vpop.permute.xlu0 %1484
  %vm1486 = vcmp.eq.s32.totalorder %v1485, 1
  %v1487 = vsel %vm1486, %v1478, %v1312
  %1488 = vst [vmem:[%s4] sm:$0xff] %v1487
  // Predicated region
  $region22: #{fast_packed_forward.1} parent=0 // pred_check
    _
  $region23: #{fast_packed_forward.1} parent=0 // pred_check_branch
    %1490 = sbr.rel (0) target = $region25
  $region24: #{fast_packed_forward.1} parent=0 // pred_region
    _
  $region25: #{fast_packed_forward.1} parent=0 // pred_fallthru
    _
  // Predicated region
  $region26: #{fast_packed_forward.1} parent=0 // pred_check
    _
  $region27: #{fast_packed_forward.1} parent=0 // pred_check_branch
    %1492 = sbr.rel (0) target = $region29
  $region28: #{fast_packed_forward.1} parent=0 // pred_region
    _
  $region29: #{fast_packed_forward.1} parent=0 // pred_fallthru
    _

</llo_original>
